<compile_context>
chip_gen: v7x
topology: tpu7x:2x2x1
jax: 0.10.0
libtpu: 0.0.40
codegen_flags: <defaults>
</compile_context>

<pallas_src>
import functools

import jax
import jax.numpy as jnp
from jax.experimental import pallas as pl
from jax.experimental.pallas import tpu as pltpu


# ---------------------------------------------------------------------------
# Fused kernel: GATConv(heads) + ReLU -> GATConv(1) + ReLU -> [skip] -> FC
#               -> log_softmax, all in VMEM.
# ---------------------------------------------------------------------------
def _gatnet_kernel(x_ref, adj_ref,
                   w1_ref, asrc1_ref, adst1_ref, b1_ref,
                   w2_ref, asrc2_ref, adst2_ref, b2_ref,
                   wfc_ref, bfc_ref,
                   o_ref, *, heads, f1, skip):
    x = x_ref[...]                                   # [N, Cin]
    neg = jnp.float32(-1e30)
    # Additive edge mask, computed ONCE and reused by every head of both
    # layers (adj[i, j] = 1 means edge j -> i; self-loops included upstream).
    adj_bias = jnp.where(adj_ref[...] > 0.0, 0.0, neg)              # [N, N]

    def gat_layer(h_in, w, asrc_sel, adst_sel, bias, nheads, fdim):
        # Batched feature transform for ALL heads: one MXU call.
        xw = jnp.dot(h_in, w, preferred_element_type=jnp.float32)   # [N, nh*F]

        # All-head attention logits via selection matrices (MXU, no XLU
        # transpose / per-head lane reductions):
        #   a_src_rows[h, j] = sum_f xw[j, h*F+f] * att_src[h, f]   (row layout)
        #   a_dst_cols[i, h] = sum_f xw[i, h*F+f] * att_dst[h, f]   (col layout)
        a_src_rows = jax.lax.dot_general(
            asrc_sel, xw, (((1,), (1,)), ((), ())),
            preferred_element_type=jnp.float32)                     # [nh, N]
        a_dst_cols = jax.lax.dot_general(
            xw, adst_sel, (((1,), (1,)), ((), ())),
            preferred_element_type=jnp.float32)                     # [N, nh]

        outs = []
        for h in range(nheads):                       # static unrolled loop
            # e[i, j] = LeakyReLU(a_dst[i] + a_src[j], slope=0.2) + mask.
            s = a_dst_cols[:, h:h + 1] + a_src_rows[h:h + 1, :]     # [N, N]
            e = jnp.maximum(s, 0.2 * s) + adj_bias    # leaky-relu + add-mask

            # Masked softmax over incoming edges (rows = destination nodes).
            m = jnp.max(e, axis=1, keepdims=True)
            p = jnp.exp(e - m)                        # masked entries -> exact 0
            denom = jnp.sum(p, axis=1, keepdims=True)

            # Aggregate first, normalize after (row scaling commutes).
            xw_h = xw[:, h * fdim:(h + 1) * fdim]                   # [N, F]
            agg = jnp.dot(p, xw_h, preferred_element_type=jnp.float32)
            agg = agg * pl.reciprocal(denom, approx=True)
            agg = agg + bias[:, h * fdim:(h + 1) * fdim]
            outs.append(jnp.maximum(agg, 0.0))        # .relu()
        return outs[0] if nheads == 1 else jnp.concatenate(outs, axis=1)

    # conv1 (heads, concat=True) + relu  -> [N, heads*f1]  (lane-dense 128)
    h1 = gat_layer(x, w1_ref[...], asrc1_ref[...], adst1_ref[...], b1_ref[...],
                   heads, f1)
    # conv2 (1 head) + relu -> [N, f2]
    f2 = w2_ref.shape[1]
    h2 = gat_layer(h1, w2_ref[...], asrc2_ref[...], adst2_ref[...], b2_ref[...],
                   1, f2)
    if skip:
        h2 = jnp.concatenate([h2, x], axis=1)

    # fc + log_softmax, on a lane-dense padded class slab (pad bias = -1e30
    # so padded columns contribute exp(.) == 0 to the normalizer).
    logits = jnp.dot(h2, wfc_ref[...],
                     preferred_element_type=jnp.float32) + bfc_ref[...]
    m = jnp.max(logits, axis=1, keepdims=True)
    s = logits - m
    lse = jnp.log(jnp.sum(jnp.exp(s), axis=1, keepdims=True))
    o_ref[...] = s - lse                              # [N, pad_c] unmasked store


# ---------------------------------------------------------------------------
# Wrapper: parameter re-layout (one-time) + single pallas_call.
# ---------------------------------------------------------------------------
def gat_net_forward(params, x, adj, *, skip=False):
    n, cin = x.shape
    heads, _, f1 = params["w1"].shape
    f2 = params["w2"].shape[2]
    fc_in = params["wfc"].shape[0]
    num_classes = params["wfc"].shape[1]

    # Head-major column layout so xw[:, h*F:(h+1)*F] == x @ W_h (matches PyG
    # concat ordering).
    w1_2d = jnp.transpose(params["w1"], (1, 0, 2)).reshape(cin, heads * f1)
    w2_2d = jnp.transpose(params["w2"], (1, 0, 2)).reshape(heads * f1, f2)

    def sel(att, nheads, fdim):
        # Block selection matrix: sel[h, h*F:(h+1)*F] = att[h, :]; turns the
        # per-head attention-logit reductions into a single MXU matmul.
        a = att.reshape(nheads, fdim)
        s = jnp.zeros((nheads, nheads * fdim), jnp.float32)
        for h in range(nheads):
            s = s.at[h, h * fdim:(h + 1) * fdim].set(a[h])
        return s

    asrc1 = sel(params["att_src1"], heads, f1)
    adst1 = sel(params["att_dst1"], heads, f1)
    asrc2 = sel(params["att_src2"], 1, f2)
    adst2 = sel(params["att_dst2"], 1, f2)
    b1 = params["bias1"].reshape(1, heads * f1)
    b2 = params["bias2"].reshape(1, f2)

    # Pad FC to a lane-dense class slab (>=128 lanes, multiple of 128).
    pad_c = max(128, ((num_classes + 127) // 128) * 128)
    wfc_pad = jnp.zeros((fc_in, pad_c), jnp.float32)
    wfc_pad = wfc_pad.at[:, :num_classes].set(params["wfc"])
    bfc_pad = jnp.full((1, pad_c), -1e30, jnp.float32)
    bfc_pad = bfc_pad.at[0, :num_classes].set(params["bfc"])

    def full(shape):
        return pl.BlockSpec(shape, lambda i, _s=shape: tuple(0 for _ in _s))

    kernel = functools.partial(_gatnet_kernel, heads=heads, f1=f1, skip=skip)
    out_padded = pl.pallas_call(
        kernel,
        out_shape=jax.ShapeDtypeStruct((n, pad_c), jnp.float32),
        grid=(1,),
        in_specs=[
            full((n, cin)),                 # x
            full((n, n)),                   # adj
            full((cin, heads * f1)),        # w1 (batched heads)
            full((heads, heads * f1)),      # att_src1 selection
            full((heads, heads * f1)),      # att_dst1 selection
            full((1, heads * f1)),          # bias1
            full((heads * f1, f2)),         # w2
            full((1, f2)),                  # att_src2
            full((1, f2)),                  # att_dst2
            full((1, f2)),                  # bias2
            full((fc_in, pad_c)),           # fc weight (lane-dense padded)
            full((1, pad_c)),               # fc bias   (lane-dense padded)
        ],
        out_specs=full((n, pad_c)),
        compiler_params=pltpu.CompilerParams(
            dimension_semantics=("arbitrary",)),
    )(x, adj, w1_2d, asrc1, adst1, b1, w2_2d, asrc2, adst2, b2,
      wfc_pad, bfc_pad)

    return out_padded[:, :num_classes]


def init_params(key, heads, in_ch, hidden_ch, out_ch, num_classes, skip=False):
    ks = jax.random.split(key, 8)
    scale = 0.1
    fc_in = out_ch + in_ch if skip else out_ch
    return {
        "w1": scale * jax.random.normal(ks[0], (heads, in_ch, hidden_ch), jnp.float32),
        "att_src1": scale * jax.random.normal(ks[1], (heads, 1, hidden_ch), jnp.float32),
        "att_dst1": scale * jax.random.normal(ks[2], (heads, 1, hidden_ch), jnp.float32),
        "bias1": jnp.zeros((heads * hidden_ch,), jnp.float32),
        "w2": scale * jax.random.normal(ks[3], (1, heads * hidden_ch, out_ch), jnp.float32),
        "att_src2": scale * jax.random.normal(ks[4], (1, 1, out_ch), jnp.float32),
        "att_dst2": scale * jax.random.normal(ks[5], (1, 1, out_ch), jnp.float32),
        "bias2": jnp.zeros((out_ch,), jnp.float32),
        "wfc": scale * jax.random.normal(ks[6], (fc_in, num_classes), jnp.float32),
        "bfc": scale * jax.random.normal(ks[7], (num_classes,), jnp.float32),
    }


if __name__ == "__main__":
    # Small synthetic graph consistent with the module's forward.
    N, E = 64, 256
    heads, in_ch, hidden_ch, out_ch, num_classes = 4, 16, 32, 32, 8
    skip = False

    key = jax.random.PRNGKey(0)
    k_x, k_e, k_p = jax.random.split(key, 3)

    x = jax.random.normal(k_x, (N, in_ch), jnp.float32)
    edge_index = jax.random.randint(k_e, (2, E), 0, N, jnp.int32)  # (src, dst)

    # Dense adjacency mask: adj[dst, src] = 1, plus self-loops (PyG default).
    adj = jnp.zeros((N, N), jnp.float32).at[edge_index[1], edge_index[0]].set(1.0)
    adj = jnp.maximum(adj, jnp.eye(N, dtype=jnp.float32))

    params = init_params(k_p, heads, in_ch, hidden_ch, out_ch, num_classes,
                         skip=skip)

    fwd = jax.jit(functools.partial(gat_net_forward, skip=skip))
    out = fwd(params, x, adj)
    out = jax.block_until_ready(out)

    assert out.shape == (N, num_classes)
    # Rows of log_softmax must exp-sum to 1.
    assert bool(jnp.all(jnp.abs(jnp.sum(jnp.exp(out), axis=1) - 1.0) < 1e-4))
    print("KERNEL_OK")
</pallas_src>

<mosaic_0001>
module attributes {stable_mosaic.version = 11 : i64} {
  func.func @_gatnet_kernel(%arg0: i32, %arg1: memref<64x16xf32, #tpu.memory_space<vmem>>, %arg2: memref<64x64xf32, #tpu.memory_space<vmem>>, %arg3: memref<16x128xf32, #tpu.memory_space<vmem>>, %arg4: memref<4x128xf32, #tpu.memory_space<vmem>>, %arg5: memref<4x128xf32, #tpu.memory_space<vmem>>, %arg6: memref<1x128xf32, #tpu.memory_space<vmem>>, %arg7: memref<128x32xf32, #tpu.memory_space<vmem>>, %arg8: memref<1x32xf32, #tpu.memory_space<vmem>>, %arg9: memref<1x32xf32, #tpu.memory_space<vmem>>, %arg10: memref<1x32xf32, #tpu.memory_space<vmem>>, %arg11: memref<32x128xf32, #tpu.memory_space<vmem>>, %arg12: memref<1x128xf32, #tpu.memory_space<vmem>>, %arg13: memref<64x128xf32, #tpu.memory_space<vmem>>) attributes {dimension_semantics = [#tpu.dimension_semantics<arbitrary>], iteration_bounds = array<i64: 1>, scalar_prefetch = 0 : i64, scratch_operands = 0 : i64, tpu.core_type = #tpu.core_type<tc>, window_params = [{pipeline_mode = #tpu.pipeline_mode<synchronous>, transform_indices = @transform_0, window_bounds = array<i64: 64, 16>}, {pipeline_mode = #tpu.pipeline_mode<synchronous>, transform_indices = @transform_1, window_bounds = array<i64: 64, 64>}, {pipeline_mode = #tpu.pipeline_mode<synchronous>, transform_indices = @transform_2, window_bounds = array<i64: 16, 128>}, {pipeline_mode = #tpu.pipeline_mode<synchronous>, transform_indices = @transform_3, window_bounds = array<i64: 4, 128>}, {pipeline_mode = #tpu.pipeline_mode<synchronous>, transform_indices = @transform_4, window_bounds = array<i64: 4, 128>}, {pipeline_mode = #tpu.pipeline_mode<synchronous>, transform_indices = @transform_5, window_bounds = array<i64: 1, 128>}, {pipeline_mode = #tpu.pipeline_mode<synchronous>, transform_indices = @transform_6, window_bounds = array<i64: 128, 32>}, {pipeline_mode = #tpu.pipeline_mode<synchronous>, transform_indices = @transform_7, window_bounds = array<i64: 1, 32>}, {pipeline_mode = #tpu.pipeline_mode<synchronous>, transform_indices = @transform_8, window_bounds = array<i64: 1, 32>}, {pipeline_mode = #tpu.pipeline_mode<synchronous>, transform_indices = @transform_9, window_bounds = array<i64: 1, 32>}, {pipeline_mode = #tpu.pipeline_mode<synchronous>, transform_indices = @transform_10, window_bounds = array<i64: 32, 128>}, {pipeline_mode = #tpu.pipeline_mode<synchronous>, transform_indices = @transform_11, window_bounds = array<i64: 1, 128>}, {pipeline_mode = #tpu.pipeline_mode<synchronous>, transform_indices = @transform_12, window_bounds = array<i64: 64, 128>}]} {
    %c0 = arith.constant 0 : index
    %c0_0 = arith.constant 0 : index
    %0 = vector.load %arg1[%c0, %c0_0] : memref<64x16xf32, #tpu.memory_space<vmem>>, vector<64x16xf32>
    %c0_1 = arith.constant 0 : index
    %c0_2 = arith.constant 0 : index
    %1 = vector.load %arg2[%c0_1, %c0_2] : memref<64x64xf32, #tpu.memory_space<vmem>>, vector<64x64xf32>
    %cst = arith.constant 0.000000e+00 : f32
    %2 = vector.broadcast %cst : f32 to vector<64x64xf32>
    %3 = arith.cmpf ogt, %1, %2 : vector<64x64xf32>
    %cst_3 = arith.constant 0.000000e+00 : f32
    %cst_4 = arith.constant -1.000000e+30 : f32
    %4 = vector.broadcast %cst_3 : f32 to vector<64x64xf32>
    %5 = vector.broadcast %cst_4 : f32 to vector<64x64xf32>
    %6 = arith.select %3, %4, %5 : vector<64x64xi1>, vector<64x64xf32>
    %c0_5 = arith.constant 0 : index
    %c0_6 = arith.constant 0 : index
    %7 = vector.load %arg3[%c0_5, %c0_6] : memref<16x128xf32, #tpu.memory_space<vmem>>, vector<16x128xf32>
    %c0_7 = arith.constant 0 : index
    %c0_8 = arith.constant 0 : index
    %8 = vector.load %arg4[%c0_7, %c0_8] : memref<4x128xf32, #tpu.memory_space<vmem>>, vector<4x128xf32>
    %c0_9 = arith.constant 0 : index
    %c0_10 = arith.constant 0 : index
    %9 = vector.load %arg5[%c0_9, %c0_10] : memref<4x128xf32, #tpu.memory_space<vmem>>, vector<4x128xf32>
    %c0_11 = arith.constant 0 : index
    %c0_12 = arith.constant 0 : index
    %10 = vector.load %arg6[%c0_11, %c0_12] : memref<1x128xf32, #tpu.memory_space<vmem>>, vector<1x128xf32>
    %cst_13 = arith.constant dense<0.000000e+00> : vector<64x128xf32>
    %11 = tpu.matmul %0, %7, %cst_13 {dimension_numbers = #tpu.dot_dimension_numbers<[1], [0], [0], [1], [0, 0, 1, 1], [], []>} : vector<64x16xf32>, vector<16x128xf32>, vector<64x128xf32> -> vector<64x128xf32>
    %cst_14 = arith.constant dense<0.000000e+00> : vector<4x64xf32>
    %12 = tpu.matmul %8, %11, %cst_14 {dimension_numbers = #tpu.dot_dimension_numbers<[1], [1], [0], [0], [0, 0, 1, 0], [], []>} : vector<4x128xf32>, vector<64x128xf32>, vector<4x64xf32> -> vector<4x64xf32>
    %cst_15 = arith.constant dense<0.000000e+00> : vector<64x4xf32>
    %13 = tpu.matmul %11, %9, %cst_15 {dimension_numbers = #tpu.dot_dimension_numbers<[1], [1], [0], [0], [0, 0, 1, 0], [], []>} : vector<64x128xf32>, vector<4x128xf32>, vector<64x4xf32> -> vector<64x4xf32>
    %14 = vector.extract_strided_slice %13 {offsets = [0, 0], sizes = [64, 1], strides = [1, 1]} : vector<64x4xf32> to vector<64x1xf32>
    %15 = vector.extract_strided_slice %12 {offsets = [0, 0], sizes = [1, 64], strides = [1, 1]} : vector<4x64xf32> to vector<1x64xf32>
    %16 = vector.broadcast %14 : vector<64x1xf32> to vector<64x64xf32>
    %17 = vector.broadcast %15 : vector<1x64xf32> to vector<64x64xf32>
    %18 = arith.addf %16, %17 : vector<64x64xf32>
    %cst_16 = arith.constant 2.000000e-01 : f32
    %19 = vector.broadcast %cst_16 : f32 to vector<64x64xf32>
    %20 = arith.mulf %19, %18 : vector<64x64xf32>
    %21 = arith.maximumf %18, %20 : vector<64x64xf32>
    %22 = arith.addf %21, %6 : vector<64x64xf32>
    %cst_17 = arith.constant dense<0xFF800000> : vector<64xf32>
    %23 = vector.multi_reduction <maximumf>, %22, %cst_17 [1] : vector<64x64xf32> to vector<64xf32>
    %24 = vector.shape_cast %23 : vector<64xf32> to vector<64x1xf32>
    %25 = vector.broadcast %24 : vector<64x1xf32> to vector<64x64xf32>
    %26 = arith.subf %22, %25 : vector<64x64xf32>
    %27 = math.exp %26 : vector<64x64xf32>
    %cst_18 = arith.constant dense<0.000000e+00> : vector<64xf32>
    %28 = vector.multi_reduction <add>, %27, %cst_18 [1] : vector<64x64xf32> to vector<64xf32>
    %29 = vector.shape_cast %28 : vector<64xf32> to vector<64x1xf32>
    %30 = vector.extract_strided_slice %11 {offsets = [0, 0], sizes = [64, 32], strides = [1, 1]} : vector<64x128xf32> to vector<64x32xf32>
    %cst_19 = arith.constant dense<0.000000e+00> : vector<64x32xf32>
    %31 = tpu.matmul %27, %30, %cst_19 {dimension_numbers = #tpu.dot_dimension_numbers<[1], [0], [0], [1], [0, 0, 1, 1], [], []>} : vector<64x64xf32>, vector<64x32xf32>, vector<64x32xf32> -> vector<64x32xf32>
    %32 = tpu.reciprocal %29 {approx = true} : vector<64x1xf32> -> vector<64x1xf32>
    %33 = vector.broadcast %32 : vector<64x1xf32> to vector<64x32xf32>
    %34 = arith.mulf %31, %33 : vector<64x32xf32>
    %35 = vector.extract_strided_slice %10 {offsets = [0, 0], sizes = [1, 32], strides = [1, 1]} : vector<1x128xf32> to vector<1x32xf32>
    %36 = vector.broadcast %35 : vector<1x32xf32> to vector<64x32xf32>
    %37 = arith.addf %34, %36 : vector<64x32xf32>
    %cst_20 = arith.constant 0.000000e+00 : f32
    %38 = vector.broadcast %cst_20 : f32 to vector<64x32xf32>
    %39 = arith.maximumf %37, %38 : vector<64x32xf32>
    %40 = vector.extract_strided_slice %13 {offsets = [0, 1], sizes = [64, 1], strides = [1, 1]} : vector<64x4xf32> to vector<64x1xf32>
    %41 = vector.extract_strided_slice %12 {offsets = [1, 0], sizes = [1, 64], strides = [1, 1]} : vector<4x64xf32> to vector<1x64xf32>
    %42 = vector.broadcast %40 : vector<64x1xf32> to vector<64x64xf32>
    %43 = vector.broadcast %41 : vector<1x64xf32> to vector<64x64xf32>
    %44 = arith.addf %42, %43 : vector<64x64xf32>
    %cst_21 = arith.constant 2.000000e-01 : f32
    %45 = vector.broadcast %cst_21 : f32 to vector<64x64xf32>
    %46 = arith.mulf %45, %44 : vector<64x64xf32>
    %47 = arith.maximumf %44, %46 : vector<64x64xf32>
    %48 = arith.addf %47, %6 : vector<64x64xf32>
    %cst_22 = arith.constant dense<0xFF800000> : vector<64xf32>
    %49 = vector.multi_reduction <maximumf>, %48, %cst_22 [1] : vector<64x64xf32> to vector<64xf32>
    %50 = vector.shape_cast %49 : vector<64xf32> to vector<64x1xf32>
    %51 = vector.broadcast %50 : vector<64x1xf32> to vector<64x64xf32>
    %52 = arith.subf %48, %51 : vector<64x64xf32>
    %53 = math.exp %52 : vector<64x64xf32>
    %cst_23 = arith.constant dense<0.000000e+00> : vector<64xf32>
    %54 = vector.multi_reduction <add>, %53, %cst_23 [1] : vector<64x64xf32> to vector<64xf32>
    %55 = vector.shape_cast %54 : vector<64xf32> to vector<64x1xf32>
    %56 = vector.extract_strided_slice %11 {offsets = [0, 32], sizes = [64, 32], strides = [1, 1]} : vector<64x128xf32> to vector<64x32xf32>
    %cst_24 = arith.constant dense<0.000000e+00> : vector<64x32xf32>
    %57 = tpu.matmul %53, %56, %cst_24 {dimension_numbers = #tpu.dot_dimension_numbers<[1], [0], [0], [1], [0, 0, 1, 1], [], []>} : vector<64x64xf32>, vector<64x32xf32>, vector<64x32xf32> -> vector<64x32xf32>
    %58 = tpu.reciprocal %55 {approx = true} : vector<64x1xf32> -> vector<64x1xf32>
    %59 = vector.broadcast %58 : vector<64x1xf32> to vector<64x32xf32>
    %60 = arith.mulf %57, %59 : vector<64x32xf32>
    %61 = vector.extract_strided_slice %10 {offsets = [0, 32], sizes = [1, 32], strides = [1, 1]} : vector<1x128xf32> to vector<1x32xf32>
    %62 = vector.broadcast %61 : vector<1x32xf32> to vector<64x32xf32>
    %63 = arith.addf %60, %62 : vector<64x32xf32>
    %cst_25 = arith.constant 0.000000e+00 : f32
    %64 = vector.broadcast %cst_25 : f32 to vector<64x32xf32>
    %65 = arith.maximumf %63, %64 : vector<64x32xf32>
    %66 = vector.extract_strided_slice %13 {offsets = [0, 2], sizes = [64, 1], strides = [1, 1]} : vector<64x4xf32> to vector<64x1xf32>
    %67 = vector.extract_strided_slice %12 {offsets = [2, 0], sizes = [1, 64], strides = [1, 1]} : vector<4x64xf32> to vector<1x64xf32>
    %68 = vector.broadcast %66 : vector<64x1xf32> to vector<64x64xf32>
    %69 = vector.broadcast %67 : vector<1x64xf32> to vector<64x64xf32>
    %70 = arith.addf %68, %69 : vector<64x64xf32>
    %cst_26 = arith.constant 2.000000e-01 : f32
    %71 = vector.broadcast %cst_26 : f32 to vector<64x64xf32>
    %72 = arith.mulf %71, %70 : vector<64x64xf32>
    %73 = arith.maximumf %70, %72 : vector<64x64xf32>
    %74 = arith.addf %73, %6 : vector<64x64xf32>
    %cst_27 = arith.constant dense<0xFF800000> : vector<64xf32>
    %75 = vector.multi_reduction <maximumf>, %74, %cst_27 [1] : vector<64x64xf32> to vector<64xf32>
    %76 = vector.shape_cast %75 : vector<64xf32> to vector<64x1xf32>
    %77 = vector.broadcast %76 : vector<64x1xf32> to vector<64x64xf32>
    %78 = arith.subf %74, %77 : vector<64x64xf32>
    %79 = math.exp %78 : vector<64x64xf32>
    %cst_28 = arith.constant dense<0.000000e+00> : vector<64xf32>
    %80 = vector.multi_reduction <add>, %79, %cst_28 [1] : vector<64x64xf32> to vector<64xf32>
    %81 = vector.shape_cast %80 : vector<64xf32> to vector<64x1xf32>
    %82 = vector.extract_strided_slice %11 {offsets = [0, 64], sizes = [64, 32], strides = [1, 1]} : vector<64x128xf32> to vector<64x32xf32>
    %cst_29 = arith.constant dense<0.000000e+00> : vector<64x32xf32>
    %83 = tpu.matmul %79, %82, %cst_29 {dimension_numbers = #tpu.dot_dimension_numbers<[1], [0], [0], [1], [0, 0, 1, 1], [], []>} : vector<64x64xf32>, vector<64x32xf32>, vector<64x32xf32> -> vector<64x32xf32>
    %84 = tpu.reciprocal %81 {approx = true} : vector<64x1xf32> -> vector<64x1xf32>
    %85 = vector.broadcast %84 : vector<64x1xf32> to vector<64x32xf32>
    %86 = arith.mulf %83, %85 : vector<64x32xf32>
    %87 = vector.extract_strided_slice %10 {offsets = [0, 64], sizes = [1, 32], strides = [1, 1]} : vector<1x128xf32> to vector<1x32xf32>
    %88 = vector.broadcast %87 : vector<1x32xf32> to vector<64x32xf32>
    %89 = arith.addf %86, %88 : vector<64x32xf32>
    %cst_30 = arith.constant 0.000000e+00 : f32
    %90 = vector.broadcast %cst_30 : f32 to vector<64x32xf32>
    %91 = arith.maximumf %89, %90 : vector<64x32xf32>
    %92 = vector.extract_strided_slice %13 {offsets = [0, 3], sizes = [64, 1], strides = [1, 1]} : vector<64x4xf32> to vector<64x1xf32>
    %93 = vector.extract_strided_slice %12 {offsets = [3, 0], sizes = [1, 64], strides = [1, 1]} : vector<4x64xf32> to vector<1x64xf32>
    %94 = vector.broadcast %92 : vector<64x1xf32> to vector<64x64xf32>
    %95 = vector.broadcast %93 : vector<1x64xf32> to vector<64x64xf32>
    %96 = arith.addf %94, %95 : vector<64x64xf32>
    %cst_31 = arith.constant 2.000000e-01 : f32
    %97 = vector.broadcast %cst_31 : f32 to vector<64x64xf32>
    %98 = arith.mulf %97, %96 : vector<64x64xf32>
    %99 = arith.maximumf %96, %98 : vector<64x64xf32>
    %100 = arith.addf %99, %6 : vector<64x64xf32>
    %cst_32 = arith.constant dense<0xFF800000> : vector<64xf32>
    %101 = vector.multi_reduction <maximumf>, %100, %cst_32 [1] : vector<64x64xf32> to vector<64xf32>
    %102 = vector.shape_cast %101 : vector<64xf32> to vector<64x1xf32>
    %103 = vector.broadcast %102 : vector<64x1xf32> to vector<64x64xf32>
    %104 = arith.subf %100, %103 : vector<64x64xf32>
    %105 = math.exp %104 : vector<64x64xf32>
    %cst_33 = arith.constant dense<0.000000e+00> : vector<64xf32>
    %106 = vector.multi_reduction <add>, %105, %cst_33 [1] : vector<64x64xf32> to vector<64xf32>
    %107 = vector.shape_cast %106 : vector<64xf32> to vector<64x1xf32>
    %108 = vector.extract_strided_slice %11 {offsets = [0, 96], sizes = [64, 32], strides = [1, 1]} : vector<64x128xf32> to vector<64x32xf32>
    %cst_34 = arith.constant dense<0.000000e+00> : vector<64x32xf32>
    %109 = tpu.matmul %105, %108, %cst_34 {dimension_numbers = #tpu.dot_dimension_numbers<[1], [0], [0], [1], [0, 0, 1, 1], [], []>} : vector<64x64xf32>, vector<64x32xf32>, vector<64x32xf32> -> vector<64x32xf32>
    %110 = tpu.reciprocal %107 {approx = true} : vector<64x1xf32> -> vector<64x1xf32>
    %111 = vector.broadcast %110 : vector<64x1xf32> to vector<64x32xf32>
    %112 = arith.mulf %109, %111 : vector<64x32xf32>
    %113 = vector.extract_strided_slice %10 {offsets = [0, 96], sizes = [1, 32], strides = [1, 1]} : vector<1x128xf32> to vector<1x32xf32>
    %114 = vector.broadcast %113 : vector<1x32xf32> to vector<64x32xf32>
    %115 = arith.addf %112, %114 : vector<64x32xf32>
    %cst_35 = arith.constant 0.000000e+00 : f32
    %116 = vector.broadcast %cst_35 : f32 to vector<64x32xf32>
    %117 = arith.maximumf %115, %116 : vector<64x32xf32>
    %118 = tpu.concatenate %39, %65, %91, %117 in 1 : vector<64x32xf32>, vector<64x32xf32>, vector<64x32xf32>, vector<64x32xf32> -> vector<64x128xf32>
    %c0_36 = arith.constant 0 : index
    %c0_37 = arith.constant 0 : index
    %119 = vector.load %arg7[%c0_36, %c0_37] : memref<128x32xf32, #tpu.memory_space<vmem>>, vector<128x32xf32>
    %c0_38 = arith.constant 0 : index
    %c0_39 = arith.constant 0 : index
    %120 = vector.load %arg8[%c0_38, %c0_39] : memref<1x32xf32, #tpu.memory_space<vmem>>, vector<1x32xf32>
    %c0_40 = arith.constant 0 : index
    %c0_41 = arith.constant 0 : index
    %121 = vector.load %arg9[%c0_40, %c0_41] : memref<1x32xf32, #tpu.memory_space<vmem>>, vector<1x32xf32>
    %c0_42 = arith.constant 0 : index
    %c0_43 = arith.constant 0 : index
    %122 = vector.load %arg10[%c0_42, %c0_43] : memref<1x32xf32, #tpu.memory_space<vmem>>, vector<1x32xf32>
    %cst_44 = arith.constant dense<0.000000e+00> : vector<64x32xf32>
    %123 = tpu.matmul %118, %119, %cst_44 {dimension_numbers = #tpu.dot_dimension_numbers<[1], [0], [0], [1], [0, 0, 1, 1], [], []>} : vector<64x128xf32>, vector<128x32xf32>, vector<64x32xf32> -> vector<64x32xf32>
    %cst_45 = arith.constant dense<0.000000e+00> : vector<1x64xf32>
    %124 = tpu.matmul %120, %123, %cst_45 {dimension_numbers = #tpu.dot_dimension_numbers<[1], [1], [0], [0], [0, 0, 1, 0], [], []>} : vector<1x32xf32>, vector<64x32xf32>, vector<1x64xf32> -> vector<1x64xf32>
    %cst_46 = arith.constant dense<0.000000e+00> : vector<64x1xf32>
    %125 = tpu.matmul %123, %121, %cst_46 {dimension_numbers = #tpu.dot_dimension_numbers<[1], [1], [0], [0], [0, 0, 1, 0], [], []>} : vector<64x32xf32>, vector<1x32xf32>, vector<64x1xf32> -> vector<64x1xf32>
    %126 = vector.broadcast %125 : vector<64x1xf32> to vector<64x64xf32>
    %127 = vector.broadcast %124 : vector<1x64xf32> to vector<64x64xf32>
    %128 = arith.addf %126, %127 : vector<64x64xf32>
    %cst_47 = arith.constant 2.000000e-01 : f32
    %129 = vector.broadcast %cst_47 : f32 to vector<64x64xf32>
    %130 = arith.mulf %129, %128 : vector<64x64xf32>
    %131 = arith.maximumf %128, %130 : vector<64x64xf32>
    %132 = arith.addf %131, %6 : vector<64x64xf32>
    %cst_48 = arith.constant dense<0xFF800000> : vector<64xf32>
    %133 = vector.multi_reduction <maximumf>, %132, %cst_48 [1] : vector<64x64xf32> to vector<64xf32>
    %134 = vector.shape_cast %133 : vector<64xf32> to vector<64x1xf32>
    %135 = vector.broadcast %134 : vector<64x1xf32> to vector<64x64xf32>
    %136 = arith.subf %132, %135 : vector<64x64xf32>
    %137 = math.exp %136 : vector<64x64xf32>
    %cst_49 = arith.constant dense<0.000000e+00> : vector<64xf32>
    %138 = vector.multi_reduction <add>, %137, %cst_49 [1] : vector<64x64xf32> to vector<64xf32>
    %139 = vector.shape_cast %138 : vector<64xf32> to vector<64x1xf32>
    %cst_50 = arith.constant dense<0.000000e+00> : vector<64x32xf32>
    %140 = tpu.matmul %137, %123, %cst_50 {dimension_numbers = #tpu.dot_dimension_numbers<[1], [0], [0], [1], [0, 0, 1, 1], [], []>} : vector<64x64xf32>, vector<64x32xf32>, vector<64x32xf32> -> vector<64x32xf32>
    %141 = tpu.reciprocal %139 {approx = true} : vector<64x1xf32> -> vector<64x1xf32>
    %142 = vector.broadcast %141 : vector<64x1xf32> to vector<64x32xf32>
    %143 = arith.mulf %140, %142 : vector<64x32xf32>
    %144 = vector.broadcast %122 : vector<1x32xf32> to vector<64x32xf32>
    %145 = arith.addf %143, %144 : vector<64x32xf32>
    %cst_51 = arith.constant 0.000000e+00 : f32
    %146 = vector.broadcast %cst_51 : f32 to vector<64x32xf32>
    %147 = arith.maximumf %145, %146 : vector<64x32xf32>
    %c0_52 = arith.constant 0 : index
    %c0_53 = arith.constant 0 : index
    %148 = vector.load %arg11[%c0_52, %c0_53] : memref<32x128xf32, #tpu.memory_space<vmem>>, vector<32x128xf32>
    %cst_54 = arith.constant dense<0.000000e+00> : vector<64x128xf32>
    %149 = tpu.matmul %147, %148, %cst_54 {dimension_numbers = #tpu.dot_dimension_numbers<[1], [0], [0], [1], [0, 0, 1, 1], [], []>} : vector<64x32xf32>, vector<32x128xf32>, vector<64x128xf32> -> vector<64x128xf32>
    %c0_55 = arith.constant 0 : index
    %c0_56 = arith.constant 0 : index
    %150 = vector.load %arg12[%c0_55, %c0_56] : memref<1x128xf32, #tpu.memory_space<vmem>>, vector<1x128xf32>
    %151 = vector.broadcast %150 : vector<1x128xf32> to vector<64x128xf32>
    %152 = arith.addf %149, %151 : vector<64x128xf32>
    %cst_57 = arith.constant dense<0xFF800000> : vector<64xf32>
    %153 = vector.multi_reduction <maximumf>, %152, %cst_57 [1] : vector<64x128xf32> to vector<64xf32>
    %154 = vector.shape_cast %153 : vector<64xf32> to vector<64x1xf32>
    %155 = vector.broadcast %154 : vector<64x1xf32> to vector<64x128xf32>
    %156 = arith.subf %152, %155 : vector<64x128xf32>
    %157 = math.exp %156 : vector<64x128xf32>
    %cst_58 = arith.constant dense<0.000000e+00> : vector<64xf32>
    %158 = vector.multi_reduction <add>, %157, %cst_58 [1] : vector<64x128xf32> to vector<64xf32>
    %159 = vector.shape_cast %158 : vector<64xf32> to vector<64x1xf32>
    %160 = math.log %159 : vector<64x1xf32>
    %161 = vector.broadcast %160 : vector<64x1xf32> to vector<64x128xf32>
    %162 = arith.subf %156, %161 : vector<64x128xf32>
    %c0_59 = arith.constant 0 : index
    %c0_60 = arith.constant 0 : index
    %163 = vector.load %arg13[%c0_59, %c0_60] : memref<64x128xf32, #tpu.memory_space<vmem>>, vector<64x128xf32>
    tpu.vector_store %arg13[%c0_59, %c0_60], %162 {strides = array<i32>} : memref<64x128xf32, #tpu.memory_space<vmem>>, vector<64x128xf32>,
    return
  }
  func.func @transform_0(%arg0: i32) -> (i32, i32) {
    %c0_i32 = arith.constant 0 : i32
    %c0_i32_0 = arith.constant 0 : i32
    %c0_i32_1 = arith.constant 0 : i32
    return %c0_i32, %c0_i32_0 : i32, i32
  }
  func.func @transform_1(%arg0: i32) -> (i32, i32) {
    %c0_i32 = arith.constant 0 : i32
    %c0_i32_0 = arith.constant 0 : i32
    %c0_i32_1 = arith.constant 0 : i32
    return %c0_i32, %c0_i32_0 : i32, i32
  }
  func.func @transform_2(%arg0: i32) -> (i32, i32) {
    %c0_i32 = arith.constant 0 : i32
    %c0_i32_0 = arith.constant 0 : i32
    %c0_i32_1 = arith.constant 0 : i32
    return %c0_i32, %c0_i32_0 : i32, i32
  }
  func.func @transform_3(%arg0: i32) -> (i32, i32) {
    %c0_i32 = arith.constant 0 : i32
    %c0_i32_0 = arith.constant 0 : i32
    %c0_i32_1 = arith.constant 0 : i32
    return %c0_i32, %c0_i32_0 : i32, i32
  }
  func.func @transform_4(%arg0: i32) -> (i32, i32) {
    %c0_i32 = arith.constant 0 : i32
    %c0_i32_0 = arith.constant 0 : i32
    %c0_i32_1 = arith.constant 0 : i32
    return %c0_i32, %c0_i32_0 : i32, i32
  }
  func.func @transform_5(%arg0: i32) -> (i32, i32) {
    %c0_i32 = arith.constant 0 : i32
    %c0_i32_0 = arith.constant 0 : i32
    %c0_i32_1 = arith.constant 0 : i32
    return %c0_i32, %c0_i32_0 : i32, i32
  }
  func.func @transform_6(%arg0: i32) -> (i32, i32) {
    %c0_i32 = arith.constant 0 : i32
    %c0_i32_0 = arith.constant 0 : i32
    %c0_i32_1 = arith.constant 0 : i32
    return %c0_i32, %c0_i32_0 : i32, i32
  }
  func.func @transform_7(%arg0: i32) -> (i32, i32) {
    %c0_i32 = arith.constant 0 : i32
    %c0_i32_0 = arith.constant 0 : i32
    %c0_i32_1 = arith.constant 0 : i32
    return %c0_i32, %c0_i32_0 : i32, i32
  }
  func.func @transform_8(%arg0: i32) -> (i32, i32) {
    %c0_i32 = arith.constant 0 : i32
    %c0_i32_0 = arith.constant 0 : i32
    %c0_i32_1 = arith.constant 0 : i32
    return %c0_i32, %c0_i32_0 : i32, i32
  }
  func.func @transform_9(%arg0: i32) -> (i32, i32) {
    %c0_i32 = arith.constant 0 : i32
    %c0_i32_0 = arith.constant 0 : i32
    %c0_i32_1 = arith.constant 0 : i32
    return %c0_i32, %c0_i32_0 : i32, i32
  }
  func.func @transform_10(%arg0: i32) -> (i32, i32) {
    %c0_i32 = arith.constant 0 : i32
    %c0_i32_0 = arith.constant 0 : i32
    %c0_i32_1 = arith.constant 0 : i32
    return %c0_i32, %c0_i32_0 : i32, i32
  }
  func.func @transform_11(%arg0: i32) -> (i32, i32) {
    %c0_i32 = arith.constant 0 : i32
    %c0_i32_0 = arith.constant 0 : i32
    %c0_i32_1 = arith.constant 0 : i32
    return %c0_i32, %c0_i32_0 : i32, i32
  }
  func.func @transform_12(%arg0: i32) -> (i32, i32) {
    %c0_i32 = arith.constant 0 : i32
    %c0_i32_0 = arith.constant 0 : i32
    %c0_i32_1 = arith.constant 0 : i32
    return %c0_i32, %c0_i32_0 : i32, i32
  }
}

</mosaic_0001>

<llo_original>
// kernel: gat_net_forward.1
$region0: #{gat_net_forward.1}
  #allocation0 [shape = 'u32[]', space=smem, size = 0x4, offset = 0x4, fixed_abs, tag = 'smem constant byte address 0x4 - core index']
  #allocation1 [shape = 'u32[144,128]{1,0:T(1,128)}', space=vmem, size = 0x12000, scoped, tag = 'internal scratch']
  %s0 = inlined_call_operand.vmem [shape: f32[64,16], index: 0, kind: input, shape index: {}]
  %s1 = inlined_call_operand.vmem [shape: f32[64,64], index: 1, kind: input, shape index: {}]
  %s2 = inlined_call_operand.vmem [shape: f32[16,128], index: 2, kind: input, shape index: {}]
  %s3 = inlined_call_operand.vmem [shape: f32[4,128], index: 3, kind: input, shape index: {}]
  %s4 = inlined_call_operand.vmem [shape: f32[4,128], index: 4, kind: input, shape index: {}]
  %s5 = inlined_call_operand.vmem [shape: f32[1,128], index: 5, kind: input, shape index: {}]
  %s6 = inlined_call_operand.vmem [shape: f32[128,32], index: 6, kind: input, shape index: {}]
  %s7 = inlined_call_operand.vmem [shape: f32[1,32], index: 7, kind: input, shape index: {}]
  %s8 = inlined_call_operand.vmem [shape: f32[1,32], index: 8, kind: input, shape index: {}]
  %s9 = inlined_call_operand.vmem [shape: f32[1,32], index: 9, kind: input, shape index: {}]
  %s10 = inlined_call_operand.vmem [shape: f32[32,128], index: 10, kind: input, shape index: {}]
  %s11 = inlined_call_operand.vmem [shape: f32[1,128], index: 11, kind: input, shape index: {}]
  %s12 = inlined_call_operand.vmem [shape: f32[64,128], index: 12, kind: output, shape index: {}]
  %s13 = sld [smem:[#allocation0]]
  $region58: #{gat_net_forward.1} parent=0
    _
  %s15 = ssub.s32 1, %s13
  %s16 = scalar_select 0, %s15, %s13
  // Predicated region
  $region2: #{gat_net_forward.1} parent=0 // pred_check
    _
  $region3: #{gat_net_forward.1} parent=0 // pred_check_branch
    %18 = sbr.rel (0) target = $region5
  $region4: #{gat_net_forward.1} parent=0 // pred_region
    _
  $region5: #{gat_net_forward.1} parent=0 // pred_fallthru
    _
  // Predicated region
  $region6: #{gat_net_forward.1} parent=0 // pred_check
    _
  $region7: #{gat_net_forward.1} parent=0 // pred_check_branch
    %20 = sbr.rel (0) target = $region9
  $region8: #{gat_net_forward.1} parent=0 // pred_region
    _
  $region9: #{gat_net_forward.1} parent=0 // pred_fallthru
    _
  // Predicated region
  $region10: #{gat_net_forward.1} parent=0 // pred_check
    _
  $region11: #{gat_net_forward.1} parent=0 // pred_check_branch
    %22 = sbr.rel (0) target = $region13
  $region12: #{gat_net_forward.1} parent=0 // pred_region
    _
  $region13: #{gat_net_forward.1} parent=0 // pred_fallthru
    _
  // Predicated region
  $region14: #{gat_net_forward.1} parent=0 // pred_check
    _
  $region15: #{gat_net_forward.1} parent=0 // pred_check_branch
    %24 = sbr.rel (0) target = $region17
  $region16: #{gat_net_forward.1} parent=0 // pred_region
    _
  $region17: #{gat_net_forward.1} parent=0 // pred_fallthru
    _
  // Predicated region
  $region18: #{gat_net_forward.1} parent=0 // pred_check
    _
  $region19: #{gat_net_forward.1} parent=0 // pred_check_branch
    %26 = sbr.rel (0) target = $region21
  $region20: #{gat_net_forward.1} parent=0 // pred_region
    _
  $region21: #{gat_net_forward.1} parent=0 // pred_fallthru
    _
  // Predicated region
  $region22: #{gat_net_forward.1} parent=0 // pred_check
    _
  $region23: #{gat_net_forward.1} parent=0 // pred_check_branch
    %28 = sbr.rel (0) target = $region25
  $region24: #{gat_net_forward.1} parent=0 // pred_region
    _
  $region25: #{gat_net_forward.1} parent=0 // pred_fallthru
    _
  // Predicated region
  $region26: #{gat_net_forward.1} parent=0 // pred_check
    _
  $region27: #{gat_net_forward.1} parent=0 // pred_check_branch
    %30 = sbr.rel (0) target = $region29
  $region28: #{gat_net_forward.1} parent=0 // pred_region
    _
  $region29: #{gat_net_forward.1} parent=0 // pred_fallthru
    _
  // Predicated region
  $region30: #{gat_net_forward.1} parent=0 // pred_check
    _
  $region31: #{gat_net_forward.1} parent=0 // pred_check_branch
    %32 = sbr.rel (0) target = $region33
  $region32: #{gat_net_forward.1} parent=0 // pred_region
    _
  $region33: #{gat_net_forward.1} parent=0 // pred_fallthru
    _
  // Predicated region
  $region34: #{gat_net_forward.1} parent=0 // pred_check
    _
  $region35: #{gat_net_forward.1} parent=0 // pred_check_branch
    %34 = sbr.rel (0) target = $region37
  $region36: #{gat_net_forward.1} parent=0 // pred_region
    _
  $region37: #{gat_net_forward.1} parent=0 // pred_fallthru
    _
  // Predicated region
  $region38: #{gat_net_forward.1} parent=0 // pred_check
    _
  $region39: #{gat_net_forward.1} parent=0 // pred_check_branch
    %36 = sbr.rel (0) target = $region41
  $region40: #{gat_net_forward.1} parent=0 // pred_region
    _
  $region41: #{gat_net_forward.1} parent=0 // pred_fallthru
    _
  // Predicated region
  $region42: #{gat_net_forward.1} parent=0 // pred_check
    _
  $region43: #{gat_net_forward.1} parent=0 // pred_check_branch
    %38 = sbr.rel (0) target = $region45
  $region44: #{gat_net_forward.1} parent=0 // pred_region
    _
  $region45: #{gat_net_forward.1} parent=0 // pred_fallthru
    _
  // Predicated region
  $region46: #{gat_net_forward.1} parent=0 // pred_check
    _
  $region47: #{gat_net_forward.1} parent=0 // pred_check_branch
    %40 = sbr.rel (0) target = $region49
  $region48: #{gat_net_forward.1} parent=0 // pred_region
    _
  $region49: #{gat_net_forward.1} parent=0 // pred_fallthru
    _
  %v41 = vld [vmem:[%s0] sm:$0xff]
  %v42 = vld [vmem:[%s0 + $0x8] sm:$0xff]
  %v43 = vld [vmem:[%s0 + $0x10] sm:$0xff]
  %v44 = vld [vmem:[%s0 + $0x18] sm:$0xff]
  %v45 = vld [vmem:[%s0 + $0x20] sm:$0xff]
  %v46 = vld [vmem:[%s0 + $0x28] sm:$0xff]
  %v47 = vld [vmem:[%s0 + $0x30] sm:$0xff]
  %v48 = vld [vmem:[%s0 + $0x38] sm:$0xff]
  %v49 = vld [vmem:[%s1] sm:$0xff]
  %v50 = vld [vmem:[%s1 + $0x8] sm:$0xff]
  %v51 = vld [vmem:[%s1 + $0x10] sm:$0xff]
  %v52 = vld [vmem:[%s1 + $0x18] sm:$0xff]
  %v53 = vld [vmem:[%s1 + $0x20] sm:$0xff]
  %v54 = vld [vmem:[%s1 + $0x28] sm:$0xff]
  %v55 = vld [vmem:[%s1 + $0x30] sm:$0xff]
  %v56 = vld [vmem:[%s1 + $0x38] sm:$0xff]
  %vm57 = vcmp.gt.f32.partialorder %v49, 0.0
  %vm58 = vcmp.gt.f32.partialorder %v50, 0.0
  %vm59 = vcmp.gt.f32.partialorder %v51, 0.0
  %vm60 = vcmp.gt.f32.partialorder %v52, 0.0
  %vm61 = vcmp.gt.f32.partialorder %v53, 0.0
  %vm62 = vcmp.gt.f32.partialorder %v54, 0.0
  %vm63 = vcmp.gt.f32.partialorder %v55, 0.0
  %vm64 = vcmp.gt.f32.partialorder %v56, 0.0
  %v65 = vsel %vm57, 0.0, -1e+30
  %v66 = vsel %vm58, 0.0, -1e+30
  %v67 = vsel %vm59, 0.0, -1e+30
  %v68 = vsel %vm60, 0.0, -1e+30
  %v69 = vsel %vm61, 0.0, -1e+30
  %v70 = vsel %vm62, 0.0, -1e+30
  %v71 = vsel %vm63, 0.0, -1e+30
  %v72 = vsel %vm64, 0.0, -1e+30
  %v73 = vld [vmem:[%s2] sm:$0xff]
  %v74 = vld [vmem:[%s2 + $0x8] sm:$0xff]
  %v75 = vld [vmem:[%s3] sm:$0xf]
  %v76 = vld [vmem:[%s4] sm:$0xf]
  %v77 = vld [vmem:[%s5] sm:$0x1]
  %vm78 = vcmask 130048
  %v80 = vsel %vm78, %v41, 0
  %v83 = vsel %vm78, %v42, 0
  %v86 = vsel %vm78, %v43, 0
  %v89 = vsel %vm78, %v44, 0
  %v92 = vsel %vm78, %v45, 0
  %v95 = vsel %vm78, %v46, 0
  %v98 = vsel %vm78, %v47, 0
  %v101 = vsel %vm78, %v48, 0
  %103 = vmatprep.subr.mxu0 0.0
  %104 = vmatpush1.msra.mxu0 %v73
  %105 = vmatprep.subr.mxu0 0.0
  %106 = vmatpush1.msra.mxu0 %v74
  %107 = vmatprep.subr.mxu0 0.0
  %108 = vmatpush1.msra.mxu0 0.0
  %109 = vmatprep.subr.mxu0 0.0
  %110 = vmatpush1.msra.mxu0 0.0
  %111 = vmatprep.subr.mxu0 0.0
  %112 = vmatpush1.msra.mxu0 0.0
  %113 = vmatprep.subr.mxu0 0.0
  %114 = vmatpush1.msra.mxu0 0.0
  %115 = vmatprep.subr.mxu0 0.0
  %116 = vmatpush1.msra.mxu0 0.0
  %117 = vmatprep.subr.mxu0 0.0
  %118 = vmatpush1.msra.mxu0 0.0
  %119 = vmatprep.subr.mxu0 0.0
  %120 = vmatpush1.msra.mxu0 0.0
  %121 = vmatprep.subr.mxu0 0.0
  %122 = vmatpush1.msra.mxu0 0.0
  %123 = vmatprep.subr.mxu0 0.0
  %124 = vmatpush1.msra.mxu0 0.0
  %125 = vmatprep.subr.mxu0 0.0
  %126 = vmatpush1.msra.mxu0 0.0
  %127 = vmatprep.subr.mxu0 0.0
  %128 = vmatpush1.msra.mxu0 0.0
  %129 = vmatprep.subr.mxu0 0.0
  %130 = vmatpush1.msra.mxu0 0.0
  %131 = vmatprep.subr.mxu0 0.0
  %132 = vmatpush1.msra.mxu0 0.0
  %133 = vmatprep.subr.mxu0 0.0
  %134 = vmatpush1.msra.mxu0 0.0
  %135 = vmatprep.subr.mxu0 0.0
  %136 = vmatpush1.msra.mxu0 0.0
  %137 = vmatprep.subr.mxu0 0.0
  %138 = vmatpush1.msra.mxu0 0.0
  %139 = vmatprep.subr.mxu0 0.0
  %140 = vmatpush1.msra.mxu0 0.0
  %141 = vmatprep.subr.mxu0 0.0
  %142 = vmatpush1.msra.mxu0 0.0
  %143 = vmatprep.subr.mxu0 0.0
  %144 = vmatpush1.msra.mxu0 0.0
  %145 = vmatprep.subr.mxu0 0.0
  %146 = vmatpush1.msra.mxu0 0.0
  %147 = vmatprep.subr.mxu0 0.0
  %148 = vmatpush1.msra.mxu0 0.0
  %149 = vmatprep.subr.mxu0 0.0
  %150 = vmatpush1.msra.mxu0 0.0
  %151 = vmatprep.subr.mxu0 0.0
  %152 = vmatpush1.msra.mxu0 0.0
  %153 = vmatprep.subr.mxu0 0.0
  %154 = vmatpush1.msra.mxu0 0.0
  %155 = vmatprep.subr.mxu0 0.0
  %156 = vmatpush1.msra.mxu0 0.0
  %157 = vmatprep.subr.mxu0 0.0
  %158 = vmatpush1.msra.mxu0 0.0
  %159 = vmatprep.subr.mxu0 0.0
  %160 = vmatpush1.msra.mxu0 0.0
  %161 = vmatprep.subr.mxu0 0.0
  %162 = vmatpush1.msra.mxu0 0.0
  %163 = vmatprep.subr.mxu0 0.0
  %164 = vmatpush1.msra.mxu0 0.0
  %165 = vmatprep.subr.mxu0 0.0
  %166 = vmatpush1.msra.mxu0 0.0
  %167 = vmatprep.mubr.f32.mxu0 0.0
  %168 = vmatmul.mubr.f32.gmra.mrb[0].mxu0 %v80
  %v169 = vpop.f32.mrb[0].mxu0
  %v170 = vadd.f32 0.0, %v169
  %v171 = vpop.f32.mrb[0].mxu0
  %172 = vmatprep.mubr.f32.mxu0 0.0
  %173 = vmatmul.mubr.f32.gmra.mrb[0].mxu0 %v83
  %v174 = vpop.f32.mrb[0].mxu0
  %v175 = vadd.f32 0.0, %v174
  %v176 = vpop.f32.mrb[0].mxu0
  %177 = vmatprep.mubr.f32.mxu0 0.0
  %178 = vmatmul.mubr.f32.gmra.mrb[0].mxu0 %v86
  %v179 = vpop.f32.mrb[0].mxu0
  %v180 = vadd.f32 0.0, %v179
  %v181 = vpop.f32.mrb[0].mxu0
  %182 = vmatprep.mubr.f32.mxu0 0.0
  %183 = vmatmul.mubr.f32.gmra.mrb[0].mxu0 %v89
  %v184 = vpop.f32.mrb[0].mxu0
  %v185 = vadd.f32 0.0, %v184
  %v186 = vpop.f32.mrb[0].mxu0
  %187 = vmatprep.mubr.f32.mxu0 0.0
  %188 = vmatmul.mubr.f32.gmra.mrb[0].mxu0 %v92
  %v189 = vpop.f32.mrb[0].mxu0
  %v190 = vadd.f32 0.0, %v189
  %v191 = vpop.f32.mrb[0].mxu0
  %192 = vmatprep.mubr.f32.mxu0 0.0
  %193 = vmatmul.mubr.f32.gmra.mrb[0].mxu0 %v95
  %v194 = vpop.f32.mrb[0].mxu0
  %v195 = vadd.f32 0.0, %v194
  %v196 = vpop.f32.mrb[0].mxu0
  %197 = vmatprep.mubr.f32.mxu0 0.0
  %198 = vmatmul.mubr.f32.gmra.mrb[0].mxu0 %v98
  %v199 = vpop.f32.mrb[0].mxu0
  %v200 = vadd.f32 0.0, %v199
  %v201 = vpop.f32.mrb[0].mxu0
  %202 = vmatprep.mubr.f32.mxu0 0.0
  %203 = vmatmul.mubr.f32.gmra.mrb[0].mxu0 %v101
  %v204 = vpop.f32.mrb[0].mxu0
  %v205 = vadd.f32 0.0, %v204
  %v206 = vpop.f32.mrb[0].mxu0
  %207 = vdwg.mxu0
  %208 = vmatprep.subr.mxu0 0.0
  %209 = vmatpush1.xpose.msra.mxu0 %v170
  %210 = vmatprep.subr.mxu0 0.0
  %211 = vmatpush1.xpose.msra.mxu0 %v175
  %212 = vmatprep.subr.mxu0 0.0
  %213 = vmatpush1.xpose.msra.mxu0 %v180
  %214 = vmatprep.subr.mxu0 0.0
  %215 = vmatpush1.xpose.msra.mxu0 %v185
  %216 = vmatprep.subr.mxu0 0.0
  %217 = vmatpush1.xpose.msra.mxu0 %v190
  %218 = vmatprep.subr.mxu0 0.0
  %219 = vmatpush1.xpose.msra.mxu0 %v195
  %220 = vmatprep.subr.mxu0 0.0
  %221 = vmatpush1.xpose.msra.mxu0 %v200
  %222 = vmatprep.subr.mxu0 0.0
  %223 = vmatpush1.xpose.msra.mxu0 %v205
  %224 = vmatprep.subr.mxu0 0.0
  %225 = vmatpush1.xpose.msra.mxu0 0.0
  %226 = vmatprep.subr.mxu0 0.0
  %227 = vmatpush1.xpose.msra.mxu0 0.0
  %228 = vmatprep.subr.mxu0 0.0
  %229 = vmatpush1.xpose.msra.mxu0 0.0
  %230 = vmatprep.subr.mxu0 0.0
  %231 = vmatpush1.xpose.msra.mxu0 0.0
  %232 = vmatprep.subr.mxu0 0.0
  %233 = vmatpush1.xpose.msra.mxu0 0.0
  %234 = vmatprep.subr.mxu0 0.0
  %235 = vmatpush1.xpose.msra.mxu0 0.0
  %236 = vmatprep.subr.mxu0 0.0
  %237 = vmatpush1.xpose.msra.mxu0 0.0
  %238 = vmatprep.subr.mxu0 0.0
  %239 = vmatpush1.xpose.msra.mxu0 0.0
  %240 = vmatprep.subr.mxu0 0.0
  %241 = vmatpush1.xpose.msra.mxu0 0.0
  %242 = vmatprep.subr.mxu0 0.0
  %243 = vmatpush1.xpose.msra.mxu0 0.0
  %244 = vmatprep.subr.mxu0 0.0
  %245 = vmatpush1.xpose.msra.mxu0 0.0
  %246 = vmatprep.subr.mxu0 0.0
  %247 = vmatpush1.xpose.msra.mxu0 0.0
  %248 = vmatprep.subr.mxu0 0.0
  %249 = vmatpush1.xpose.msra.mxu0 0.0
  %250 = vmatprep.subr.mxu0 0.0
  %251 = vmatpush1.xpose.msra.mxu0 0.0
  %252 = vmatprep.subr.mxu0 0.0
  %253 = vmatpush1.xpose.msra.mxu0 0.0
  %254 = vmatprep.subr.mxu0 0.0
  %255 = vmatpush1.xpose.msra.mxu0 0.0
  %256 = vmatprep.subr.mxu0 0.0
  %257 = vmatpush1.xpose.msra.mxu0 0.0
  %258 = vmatprep.subr.mxu0 0.0
  %259 = vmatpush1.xpose.msra.mxu0 0.0
  %260 = vmatprep.subr.mxu0 0.0
  %261 = vmatpush1.xpose.msra.mxu0 0.0
  %262 = vmatprep.subr.mxu0 0.0
  %263 = vmatpush1.xpose.msra.mxu0 0.0
  %264 = vmatprep.subr.mxu0 0.0
  %265 = vmatpush1.xpose.msra.mxu0 0.0
  %266 = vmatprep.subr.mxu0 0.0
  %267 = vmatpush1.xpose.msra.mxu0 0.0
  %268 = vmatprep.subr.mxu0 0.0
  %269 = vmatpush1.xpose.msra.mxu0 0.0
  %270 = vmatprep.subr.mxu0 0.0
  %271 = vmatpush1.xpose.msra.mxu0 0.0
  %272 = vmatprep.mubr.f32.mxu0 0.0
  %273 = vmatmul.mubr.f32.gmra.mrb[0].mxu0 %v75
  %v274 = vpop.f32.mrb[0].mxu0
  %v275 = vadd.f32 0.0, %v274
  %v276 = vpop.f32.mrb[0].mxu0
  %277 = vdwg.mxu0
  %278 = vmatprep.subr.mxu0 0.0
  %279 = vmatpush1.xpose.msra.mxu0 %v76
  %280 = vmatprep.subr.mxu0 0.0
  %281 = vmatpush1.xpose.msra.mxu0 0.0
  %282 = vmatprep.subr.mxu0 0.0
  %283 = vmatpush1.xpose.msra.mxu0 0.0
  %284 = vmatprep.subr.mxu0 0.0
  %285 = vmatpush1.xpose.msra.mxu0 0.0
  %286 = vmatprep.subr.mxu0 0.0
  %287 = vmatpush1.xpose.msra.mxu0 0.0
  %288 = vmatprep.subr.mxu0 0.0
  %289 = vmatpush1.xpose.msra.mxu0 0.0
  %290 = vmatprep.subr.mxu0 0.0
  %291 = vmatpush1.xpose.msra.mxu0 0.0
  %292 = vmatprep.subr.mxu0 0.0
  %293 = vmatpush1.xpose.msra.mxu0 0.0
  %294 = vmatprep.subr.mxu0 0.0
  %295 = vmatpush1.xpose.msra.mxu0 0.0
  %296 = vmatprep.subr.mxu0 0.0
  %297 = vmatpush1.xpose.msra.mxu0 0.0
  %298 = vmatprep.subr.mxu0 0.0
  %299 = vmatpush1.xpose.msra.mxu0 0.0
  %300 = vmatprep.subr.mxu0 0.0
  %301 = vmatpush1.xpose.msra.mxu0 0.0
  %302 = vmatprep.subr.mxu0 0.0
  %303 = vmatpush1.xpose.msra.mxu0 0.0
  %304 = vmatprep.subr.mxu0 0.0
  %305 = vmatpush1.xpose.msra.mxu0 0.0
  %306 = vmatprep.subr.mxu0 0.0
  %307 = vmatpush1.xpose.msra.mxu0 0.0
  %308 = vmatprep.subr.mxu0 0.0
  %309 = vmatpush1.xpose.msra.mxu0 0.0
  %310 = vmatprep.subr.mxu0 0.0
  %311 = vmatpush1.xpose.msra.mxu0 0.0
  %312 = vmatprep.subr.mxu0 0.0
  %313 = vmatpush1.xpose.msra.mxu0 0.0
  %314 = vmatprep.subr.mxu0 0.0
  %315 = vmatpush1.xpose.msra.mxu0 0.0
  %316 = vmatprep.subr.mxu0 0.0
  %317 = vmatpush1.xpose.msra.mxu0 0.0
  %318 = vmatprep.subr.mxu0 0.0
  %319 = vmatpush1.xpose.msra.mxu0 0.0
  %320 = vmatprep.subr.mxu0 0.0
  %321 = vmatpush1.xpose.msra.mxu0 0.0
  %322 = vmatprep.subr.mxu0 0.0
  %323 = vmatpush1.xpose.msra.mxu0 0.0
  %324 = vmatprep.subr.mxu0 0.0
  %325 = vmatpush1.xpose.msra.mxu0 0.0
  %326 = vmatprep.subr.mxu0 0.0
  %327 = vmatpush1.xpose.msra.mxu0 0.0
  %328 = vmatprep.subr.mxu0 0.0
  %329 = vmatpush1.xpose.msra.mxu0 0.0
  %330 = vmatprep.subr.mxu0 0.0
  %331 = vmatpush1.xpose.msra.mxu0 0.0
  %332 = vmatprep.subr.mxu0 0.0
  %333 = vmatpush1.xpose.msra.mxu0 0.0
  %334 = vmatprep.subr.mxu0 0.0
  %335 = vmatpush1.xpose.msra.mxu0 0.0
  %336 = vmatprep.subr.mxu0 0.0
  %337 = vmatpush1.xpose.msra.mxu0 0.0
  %338 = vmatprep.subr.mxu0 0.0
  %339 = vmatpush1.xpose.msra.mxu0 0.0
  %340 = vmatprep.subr.mxu0 0.0
  %341 = vmatpush1.xpose.msra.mxu0 0.0
  %342 = vmatprep.mubr.f32.mxu0 0.0
  %343 = vmatmul.mubr.f32.gmra.mrb[0].mxu0 %v170
  %v344 = vpop.f32.mrb[0].mxu0
  %v345 = vadd.f32 0.0, %v344
  %v346 = vpop.f32.mrb[0].mxu0
  %347 = vmatprep.mubr.f32.mxu0 0.0
  %348 = vmatmul.mubr.f32.gmra.mrb[0].mxu0 %v175
  %v349 = vpop.f32.mrb[0].mxu0
  %v350 = vadd.f32 0.0, %v349
  %v351 = vpop.f32.mrb[0].mxu0
  %352 = vmatprep.mubr.f32.mxu0 0.0
  %353 = vmatmul.mubr.f32.gmra.mrb[0].mxu0 %v180
  %v354 = vpop.f32.mrb[0].mxu0
  %v355 = vadd.f32 0.0, %v354
  %v356 = vpop.f32.mrb[0].mxu0
  %357 = vmatprep.mubr.f32.mxu0 0.0
  %358 = vmatmul.mubr.f32.gmra.mrb[0].mxu0 %v185
  %v359 = vpop.f32.mrb[0].mxu0
  %v360 = vadd.f32 0.0, %v359
  %v361 = vpop.f32.mrb[0].mxu0
  %362 = vmatprep.mubr.f32.mxu0 0.0
  %363 = vmatmul.mubr.f32.gmra.mrb[0].mxu0 %v190
  %v364 = vpop.f32.mrb[0].mxu0
  %v365 = vadd.f32 0.0, %v364
  %v366 = vpop.f32.mrb[0].mxu0
  %367 = vmatprep.mubr.f32.mxu0 0.0
  %368 = vmatmul.mubr.f32.gmra.mrb[0].mxu0 %v195
  %v369 = vpop.f32.mrb[0].mxu0
  %v370 = vadd.f32 0.0, %v369
  %v371 = vpop.f32.mrb[0].mxu0
  %372 = vmatprep.mubr.f32.mxu0 0.0
  %373 = vmatmul.mubr.f32.gmra.mrb[0].mxu0 %v200
  %v374 = vpop.f32.mrb[0].mxu0
  %v375 = vadd.f32 0.0, %v374
  %v376 = vpop.f32.mrb[0].mxu0
  %377 = vmatprep.mubr.f32.mxu0 0.0
  %378 = vmatmul.mubr.f32.gmra.mrb[0].mxu0 %v205
  %v379 = vpop.f32.mrb[0].mxu0
  %v380 = vadd.f32 0.0, %v379
  %v381 = vpop.f32.mrb[0].mxu0
  %382 = vdwg.mxu0
  %384 = vset.pattern.permute.xlu0 0
  %385 = vperm.xlu0 %384, %v345
  %v386 = vpop.permute.xlu0 %385
  %389 = vset.pattern.permute.xlu0 0
  %390 = vperm.xlu0 %389, %v350
  %v391 = vpop.permute.xlu0 %390
  %394 = vset.pattern.permute.xlu0 0
  %395 = vperm.xlu0 %394, %v355
  %v396 = vpop.permute.xlu0 %395
  %399 = vset.pattern.permute.xlu0 0
  %400 = vperm.xlu0 %399, %v360
  %v401 = vpop.permute.xlu0 %400
  %404 = vset.pattern.permute.xlu0 0
  %405 = vperm.xlu0 %404, %v365
  %v406 = vpop.permute.xlu0 %405
  %409 = vset.pattern.permute.xlu0 0
  %410 = vperm.xlu0 %409, %v370
  %v411 = vpop.permute.xlu0 %410
  %414 = vset.pattern.permute.xlu0 0
  %415 = vperm.xlu0 %414, %v375
  %v416 = vpop.permute.xlu0 %415
  %419 = vset.pattern.permute.xlu0 0
  %420 = vperm.xlu0 %419, %v380
  %v421 = vpop.permute.xlu0 %420
  %v423 = vlaneseq
  %v424 = vshrl.u32 %v423, 7
  %v425 = vsub.s32 0, %v424
  %v426 = vrot.slane %v275, %v425
  %v427 = vadd.f32 %v386, %v426
  %v428 = vadd.f32 %v391, %v426
  %v429 = vadd.f32 %v396, %v426
  %v430 = vadd.f32 %v401, %v426
  %v431 = vadd.f32 %v406, %v426
  %v432 = vadd.f32 %v411, %v426
  %v433 = vadd.f32 %v416, %v426
  %v434 = vadd.f32 %v421, %v426
  %v435 = vmul.f32 %v427, 0.2
  %v436 = vmul.f32 %v428, 0.2
  %v437 = vmul.f32 %v429, 0.2
  %v438 = vmul.f32 %v430, 0.2
  %v439 = vmul.f32 %v431, 0.2
  %v440 = vmul.f32 %v432, 0.2
  %v441 = vmul.f32 %v433, 0.2
  %v442 = vmul.f32 %v434, 0.2
  %v443 = vmax.f32 %v427, %v435
  %v444 = vmax.f32 %v428, %v436
  %v445 = vmax.f32 %v429, %v437
  %v446 = vmax.f32 %v430, %v438
  %v447 = vmax.f32 %v431, %v439
  %v448 = vmax.f32 %v432, %v440
  %v449 = vmax.f32 %v433, %v441
  %v450 = vmax.f32 %v434, %v442
  %v451 = vadd.f32 %v443, %v65
  %v452 = vadd.f32 %v444, %v66
  %v453 = vadd.f32 %v445, %v67
  %v454 = vadd.f32 %v446, %v68
  %v455 = vadd.f32 %v447, %v69
  %v456 = vadd.f32 %v448, %v70
  %v457 = vadd.f32 %v449, %v71
  %v458 = vadd.f32 %v450, %v72
  %vm459 = vcmask 523264
  %v460 = vsel %vm459, %v451, -inf
  %461 = vmax.xlane.f32.xlu0 %v460
  %v462 = vpop.xlane.xlu0 %461
  %v463 = vsel %vm459, %v452, -inf
  %464 = vmax.xlane.f32.xlu0 %v463
  %v465 = vpop.xlane.xlu0 %464
  %v466 = vsel %vm459, %v453, -inf
  %467 = vmax.xlane.f32.xlu0 %v466
  %v468 = vpop.xlane.xlu0 %467
  %v469 = vsel %vm459, %v454, -inf
  %470 = vmax.xlane.f32.xlu0 %v469
  %v471 = vpop.xlane.xlu0 %470
  %v472 = vsel %vm459, %v455, -inf
  %473 = vmax.xlane.f32.xlu0 %v472
  %v474 = vpop.xlane.xlu0 %473
  %v475 = vsel %vm459, %v456, -inf
  %476 = vmax.xlane.f32.xlu0 %v475
  %v477 = vpop.xlane.xlu0 %476
  %v478 = vsel %vm459, %v457, -inf
  %479 = vmax.xlane.f32.xlu0 %v478
  %v480 = vpop.xlane.xlu0 %479
  %v481 = vsel %vm459, %v458, -inf
  %482 = vmax.xlane.f32.xlu0 %v481
  %v483 = vpop.xlane.xlu0 %482
  %v484 = vsub.f32 %v451, %v462
  %v485 = vsub.f32 %v452, %v465
  %v486 = vsub.f32 %v453, %v468
  %v487 = vsub.f32 %v454, %v471
  %v488 = vsub.f32 %v455, %v474
  %v489 = vsub.f32 %v456, %v477
  %v490 = vsub.f32 %v457, %v480
  %v491 = vsub.f32 %v458, %v483
  %v492 = vmul.f32 %v484, 1.442695
  %v493 = vpow.pop %v492
  %v494 = vmul.f32 %v485, 1.442695
  %v495 = vpow.pop %v494
  %v496 = vmul.f32 %v486, 1.442695
  %v497 = vpow.pop %v496
  %v498 = vmul.f32 %v487, 1.442695
  %v499 = vpow.pop %v498
  %v500 = vmul.f32 %v488, 1.442695
  %v501 = vpow.pop %v500
  %v502 = vmul.f32 %v489, 1.442695
  %v503 = vpow.pop %v502
  %v504 = vmul.f32 %v490, 1.442695
  %v505 = vpow.pop %v504
  %v506 = vmul.f32 %v491, 1.442695
  %v507 = vpow.pop %v506
  %v508 = vsel %vm459, %v493, 0.0
  %509 = vadd.xlane.f32.xlu0 %v508
  %v510 = vpop.xlane.xlu0 %509
  %v511 = vsel %vm459, %v495, 0.0
  %512 = vadd.xlane.f32.xlu0 %v511
  %v513 = vpop.xlane.xlu0 %512
  %v514 = vsel %vm459, %v497, 0.0
  %515 = vadd.xlane.f32.xlu0 %v514
  %v516 = vpop.xlane.xlu0 %515
  %v517 = vsel %vm459, %v499, 0.0
  %518 = vadd.xlane.f32.xlu0 %v517
  %v519 = vpop.xlane.xlu0 %518
  %v520 = vsel %vm459, %v501, 0.0
  %521 = vadd.xlane.f32.xlu0 %v520
  %v522 = vpop.xlane.xlu0 %521
  %v523 = vsel %vm459, %v503, 0.0
  %524 = vadd.xlane.f32.xlu0 %v523
  %v525 = vpop.xlane.xlu0 %524
  %v526 = vsel %vm459, %v505, 0.0
  %527 = vadd.xlane.f32.xlu0 %v526
  %v528 = vpop.xlane.xlu0 %527
  %v529 = vsel %vm459, %v507, 0.0
  %530 = vadd.xlane.f32.xlu0 %v529
  %v531 = vpop.xlane.xlu0 %530
  %v533 = vsel %vm459, %v493, 0
  %v536 = vsel %vm459, %v495, 0
  %v539 = vsel %vm459, %v497, 0
  %v542 = vsel %vm459, %v499, 0
  %v545 = vsel %vm459, %v501, 0
  %v548 = vsel %vm459, %v503, 0
  %v551 = vsel %vm459, %v505, 0
  %v554 = vsel %vm459, %v507, 0
  %556 = vmatprep.subr.mxu0 0.0
  %557 = vmatpush1.msra.mxu0 %v170
  %558 = vmatprep.subr.mxu0 0.0
  %559 = vmatpush1.msra.mxu0 %v175
  %560 = vmatprep.subr.mxu0 0.0
  %561 = vmatpush1.msra.mxu0 %v180
  %562 = vmatprep.subr.mxu0 0.0
  %563 = vmatpush1.msra.mxu0 %v185
  %564 = vmatprep.subr.mxu0 0.0
  %565 = vmatpush1.msra.mxu0 %v190
  %566 = vmatprep.subr.mxu0 0.0
  %567 = vmatpush1.msra.mxu0 %v195
  %568 = vmatprep.subr.mxu0 0.0
  %569 = vmatpush1.msra.mxu0 %v200
  %570 = vmatprep.subr.mxu0 0.0
  %571 = vmatpush1.msra.mxu0 %v205
  %572 = vmatprep.subr.mxu0 0.0
  %573 = vmatpush1.msra.mxu0 0.0
  %574 = vmatprep.subr.mxu0 0.0
  %575 = vmatpush1.msra.mxu0 0.0
  %576 = vmatprep.subr.mxu0 0.0
  %577 = vmatpush1.msra.mxu0 0.0
  %578 = vmatprep.subr.mxu0 0.0
  %579 = vmatpush1.msra.mxu0 0.0
  %580 = vmatprep.subr.mxu0 0.0
  %581 = vmatpush1.msra.mxu0 0.0
  %582 = vmatprep.subr.mxu0 0.0
  %583 = vmatpush1.msra.mxu0 0.0
  %584 = vmatprep.subr.mxu0 0.0
  %585 = vmatpush1.msra.mxu0 0.0
  %586 = vmatprep.subr.mxu0 0.0
  %587 = vmatpush1.msra.mxu0 0.0
  %588 = vmatprep.subr.mxu0 0.0
  %589 = vmatpush1.msra.mxu0 0.0
  %590 = vmatprep.subr.mxu0 0.0
  %591 = vmatpush1.msra.mxu0 0.0
  %592 = vmatprep.subr.mxu0 0.0
  %593 = vmatpush1.msra.mxu0 0.0
  %594 = vmatprep.subr.mxu0 0.0
  %595 = vmatpush1.msra.mxu0 0.0
  %596 = vmatprep.subr.mxu0 0.0
  %597 = vmatpush1.msra.mxu0 0.0
  %598 = vmatprep.subr.mxu0 0.0
  %599 = vmatpush1.msra.mxu0 0.0
  %600 = vmatprep.subr.mxu0 0.0
  %601 = vmatpush1.msra.mxu0 0.0
  %602 = vmatprep.subr.mxu0 0.0
  %603 = vmatpush1.msra.mxu0 0.0
  %604 = vmatprep.subr.mxu0 0.0
  %605 = vmatpush1.msra.mxu0 0.0
  %606 = vmatprep.subr.mxu0 0.0
  %607 = vmatpush1.msra.mxu0 0.0
  %608 = vmatprep.subr.mxu0 0.0
  %609 = vmatpush1.msra.mxu0 0.0
  %610 = vmatprep.subr.mxu0 0.0
  %611 = vmatpush1.msra.mxu0 0.0
  %612 = vmatprep.subr.mxu0 0.0
  %613 = vmatpush1.msra.mxu0 0.0
  %614 = vmatprep.subr.mxu0 0.0
  %615 = vmatpush1.msra.mxu0 0.0
  %616 = vmatprep.subr.mxu0 0.0
  %617 = vmatpush1.msra.mxu0 0.0
  %618 = vmatprep.subr.mxu0 0.0
  %619 = vmatpush1.msra.mxu0 0.0
  %620 = vmatprep.mubr.f32.mxu0 0.0
  %621 = vmatmul.mubr.f32.gmra.mrb[0].mxu0 %v533
  %v622 = vpop.f32.mrb[0].mxu0
  %v623 = vadd.f32 0.0, %v622
  %v624 = vpop.f32.mrb[0].mxu0
  %625 = vmatprep.mubr.f32.mxu0 0.0
  %626 = vmatmul.mubr.f32.gmra.mrb[0].mxu0 %v536
  %v627 = vpop.f32.mrb[0].mxu0
  %v628 = vadd.f32 0.0, %v627
  %v629 = vpop.f32.mrb[0].mxu0
  %630 = vmatprep.mubr.f32.mxu0 0.0
  %631 = vmatmul.mubr.f32.gmra.mrb[0].mxu0 %v539
  %v632 = vpop.f32.mrb[0].mxu0
  %v633 = vadd.f32 0.0, %v632
  %v634 = vpop.f32.mrb[0].mxu0
  %635 = vmatprep.mubr.f32.mxu0 0.0
  %636 = vmatmul.mubr.f32.gmra.mrb[0].mxu0 %v542
  %v637 = vpop.f32.mrb[0].mxu0
  %v638 = vadd.f32 0.0, %v637
  %v639 = vpop.f32.mrb[0].mxu0
  %640 = vmatprep.mubr.f32.mxu0 0.0
  %641 = vmatmul.mubr.f32.gmra.mrb[0].mxu0 %v545
  %v642 = vpop.f32.mrb[0].mxu0
  %v643 = vadd.f32 0.0, %v642
  %v644 = vpop.f32.mrb[0].mxu0
  %645 = vmatprep.mubr.f32.mxu0 0.0
  %646 = vmatmul.mubr.f32.gmra.mrb[0].mxu0 %v548
  %v647 = vpop.f32.mrb[0].mxu0
  %v648 = vadd.f32 0.0, %v647
  %v649 = vpop.f32.mrb[0].mxu0
  %650 = vmatprep.mubr.f32.mxu0 0.0
  %651 = vmatmul.mubr.f32.gmra.mrb[0].mxu0 %v551
  %v652 = vpop.f32.mrb[0].mxu0
  %v653 = vadd.f32 0.0, %v652
  %v654 = vpop.f32.mrb[0].mxu0
  %655 = vmatprep.mubr.f32.mxu0 0.0
  %656 = vmatmul.mubr.f32.gmra.mrb[0].mxu0 %v554
  %v657 = vpop.f32.mrb[0].mxu0
  %v658 = vadd.f32 0.0, %v657
  %v659 = vpop.f32.mrb[0].mxu0
  %660 = vdwg.mxu0
  %v661 = vrcp.pop %v510
  %v662 = vrcp.pop %v513
  %v663 = vrcp.pop %v516
  %v664 = vrcp.pop %v519
  %v665 = vrcp.pop %v522
  %v666 = vrcp.pop %v525
  %v667 = vrcp.pop %v528
  %v668 = vrcp.pop %v531
  %v669 = vmul.f32 %v623, %v661
  %v670 = vmul.f32 %v628, %v662
  %v671 = vmul.f32 %v633, %v663
  %v672 = vmul.f32 %v638, %v664
  %v673 = vmul.f32 %v643, %v665
  %v674 = vmul.f32 %v648, %v666
  %v675 = vmul.f32 %v653, %v667
  %v676 = vmul.f32 %v658, %v668
  %v678 = vlaneseq
  %v679 = vshrl.u32 %v678, 7
  %v680 = vsub.s32 0, %v679
  %v681 = vrot.slane %v77, %v680
  %v683 = vadd.f32 %v669, %v681
  %v684 = vadd.f32 %v670, %v681
  %v685 = vadd.f32 %v671, %v681
  %v686 = vadd.f32 %v672, %v681
  %v687 = vadd.f32 %v673, %v681
  %v688 = vadd.f32 %v674, %v681
  %v689 = vadd.f32 %v675, %v681
  %v690 = vadd.f32 %v676, %v681
  %v691 = vmax.f32 %v683, 0.0
  %v692 = vmax.f32 %v684, 0.0
  %v693 = vmax.f32 %v685, 0.0
  %v694 = vmax.f32 %v686, 0.0
  %v695 = vmax.f32 %v687, 0.0
  %v696 = vmax.f32 %v688, 0.0
  %v697 = vmax.f32 %v689, 0.0
  %v698 = vmax.f32 %v690, 0.0
  %699 = vset.pattern.permute.xlu0 1
  %700 = vperm.xlu0 %699, %v345
  %v701 = vpop.permute.xlu0 %700
  %703 = vset.pattern.permute.xlu0 1
  %704 = vperm.xlu0 %703, %v350
  %v705 = vpop.permute.xlu0 %704
  %707 = vset.pattern.permute.xlu0 1
  %708 = vperm.xlu0 %707, %v355
  %v709 = vpop.permute.xlu0 %708
  %711 = vset.pattern.permute.xlu0 1
  %712 = vperm.xlu0 %711, %v360
  %v713 = vpop.permute.xlu0 %712
  %715 = vset.pattern.permute.xlu0 1
  %716 = vperm.xlu0 %715, %v365
  %v717 = vpop.permute.xlu0 %716
  %719 = vset.pattern.permute.xlu0 1
  %720 = vperm.xlu0 %719, %v370
  %v721 = vpop.permute.xlu0 %720
  %723 = vset.pattern.permute.xlu0 1
  %724 = vperm.xlu0 %723, %v375
  %v725 = vpop.permute.xlu0 %724
  %727 = vset.pattern.permute.xlu0 1
  %728 = vperm.xlu0 %727, %v380
  %v729 = vpop.permute.xlu0 %728
  %v731 = vlaneseq
  %v732 = vshrl.u32 %v731, 7
  %v733 = vsub.s32 1, %v732
  %v734 = vrot.slane %v275, %v733
  %v735 = vadd.f32 %v701, %v734
  %v736 = vadd.f32 %v705, %v734
  %v737 = vadd.f32 %v709, %v734
  %v738 = vadd.f32 %v713, %v734
  %v739 = vadd.f32 %v717, %v734
  %v740 = vadd.f32 %v721, %v734
  %v741 = vadd.f32 %v725, %v734
  %v742 = vadd.f32 %v729, %v734
  %v743 = vmul.f32 %v735, 0.2
  %v744 = vmul.f32 %v736, 0.2
  %v745 = vmul.f32 %v737, 0.2
  %v746 = vmul.f32 %v738, 0.2
  %v747 = vmul.f32 %v739, 0.2
  %v748 = vmul.f32 %v740, 0.2
  %v749 = vmul.f32 %v741, 0.2
  %v750 = vmul.f32 %v742, 0.2
  %v751 = vmax.f32 %v735, %v743
  %v752 = vmax.f32 %v736, %v744
  %v753 = vmax.f32 %v737, %v745
  %v754 = vmax.f32 %v738, %v746
  %v755 = vmax.f32 %v739, %v747
  %v756 = vmax.f32 %v740, %v748
  %v757 = vmax.f32 %v741, %v749
  %v758 = vmax.f32 %v742, %v750
  %v759 = vadd.f32 %v751, %v65
  %v760 = vadd.f32 %v752, %v66
  %v761 = vadd.f32 %v753, %v67
  %v762 = vadd.f32 %v754, %v68
  %v763 = vadd.f32 %v755, %v69
  %v764 = vadd.f32 %v756, %v70
  %v765 = vadd.f32 %v757, %v71
  %v766 = vadd.f32 %v758, %v72
  %v767 = vsel %vm459, %v759, -inf
  %768 = vmax.xlane.f32.xlu0 %v767
  %v769 = vpop.xlane.xlu0 %768
  %v770 = vsel %vm459, %v760, -inf
  %771 = vmax.xlane.f32.xlu0 %v770
  %v772 = vpop.xlane.xlu0 %771
  %v773 = vsel %vm459, %v761, -inf
  %774 = vmax.xlane.f32.xlu0 %v773
  %v775 = vpop.xlane.xlu0 %774
  %v776 = vsel %vm459, %v762, -inf
  %777 = vmax.xlane.f32.xlu0 %v776
  %v778 = vpop.xlane.xlu0 %777
  %v779 = vsel %vm459, %v763, -inf
  %780 = vmax.xlane.f32.xlu0 %v779
  %v781 = vpop.xlane.xlu0 %780
  %v782 = vsel %vm459, %v764, -inf
  %783 = vmax.xlane.f32.xlu0 %v782
  %v784 = vpop.xlane.xlu0 %783
  %v785 = vsel %vm459, %v765, -inf
  %786 = vmax.xlane.f32.xlu0 %v785
  %v787 = vpop.xlane.xlu0 %786
  %v788 = vsel %vm459, %v766, -inf
  %789 = vmax.xlane.f32.xlu0 %v788
  %v790 = vpop.xlane.xlu0 %789
  %v791 = vsub.f32 %v759, %v769
  %v792 = vsub.f32 %v760, %v772
  %v793 = vsub.f32 %v761, %v775
  %v794 = vsub.f32 %v762, %v778
  %v795 = vsub.f32 %v763, %v781
  %v796 = vsub.f32 %v764, %v784
  %v797 = vsub.f32 %v765, %v787
  %v798 = vsub.f32 %v766, %v790
  %v799 = vmul.f32 %v791, 1.442695
  %v800 = vpow.pop %v799
  %v801 = vmul.f32 %v792, 1.442695
  %v802 = vpow.pop %v801
  %v803 = vmul.f32 %v793, 1.442695
  %v804 = vpow.pop %v803
  %v805 = vmul.f32 %v794, 1.442695
  %v806 = vpow.pop %v805
  %v807 = vmul.f32 %v795, 1.442695
  %v808 = vpow.pop %v807
  %v809 = vmul.f32 %v796, 1.442695
  %v810 = vpow.pop %v809
  %v811 = vmul.f32 %v797, 1.442695
  %v812 = vpow.pop %v811
  %v813 = vmul.f32 %v798, 1.442695
  %v814 = vpow.pop %v813
  %v815 = vsel %vm459, %v800, 0.0
  %816 = vadd.xlane.f32.xlu0 %v815
  %v817 = vpop.xlane.xlu0 %816
  %v818 = vsel %vm459, %v802, 0.0
  %819 = vadd.xlane.f32.xlu0 %v818
  %v820 = vpop.xlane.xlu0 %819
  %v821 = vsel %vm459, %v804, 0.0
  %822 = vadd.xlane.f32.xlu0 %v821
  %v823 = vpop.xlane.xlu0 %822
  %v824 = vsel %vm459, %v806, 0.0
  %825 = vadd.xlane.f32.xlu0 %v824
  %v826 = vpop.xlane.xlu0 %825
  %v827 = vsel %vm459, %v808, 0.0
  %828 = vadd.xlane.f32.xlu0 %v827
  %v829 = vpop.xlane.xlu0 %828
  %v830 = vsel %vm459, %v810, 0.0
  %831 = vadd.xlane.f32.xlu0 %v830
  %v832 = vpop.xlane.xlu0 %831
  %v833 = vsel %vm459, %v812, 0.0
  %834 = vadd.xlane.f32.xlu0 %v833
  %v835 = vpop.xlane.xlu0 %834
  %v836 = vsel %vm459, %v814, 0.0
  %837 = vadd.xlane.f32.xlu0 %v836
  %v838 = vpop.xlane.xlu0 %837
  %847 = vrot.lane.b32.xlu0 %v170, 96
  %v848 = vpop.permute.xlu0 %847
  %849 = vrot.lane.b32.xlu0 %v175, 96
  %v850 = vpop.permute.xlu0 %849
  %851 = vrot.lane.b32.xlu0 %v180, 96
  %v852 = vpop.permute.xlu0 %851
  %853 = vrot.lane.b32.xlu0 %v185, 96
  %v854 = vpop.permute.xlu0 %853
  %855 = vrot.lane.b32.xlu0 %v190, 96
  %v856 = vpop.permute.xlu0 %855
  %857 = vrot.lane.b32.xlu0 %v195, 96
  %v858 = vpop.permute.xlu0 %857
  %859 = vrot.lane.b32.xlu0 %v200, 96
  %v860 = vpop.permute.xlu0 %859
  %861 = vrot.lane.b32.xlu0 %v205, 96
  %v862 = vpop.permute.xlu0 %861
  %v872 = vsel %vm459, %v800, 0
  %v875 = vsel %vm459, %v802, 0
  %v878 = vsel %vm459, %v804, 0
  %v881 = vsel %vm459, %v806, 0
  %v884 = vsel %vm459, %v808, 0
  %v887 = vsel %vm459, %v810, 0
  %v890 = vsel %vm459, %v812, 0
  %v893 = vsel %vm459, %v814, 0
  %895 = vmatprep.subr.mxu0 0.0
  %896 = vmatpush1.msra.mxu0 %v848
  %897 = vmatprep.subr.mxu0 0.0
  %898 = vmatpush1.msra.mxu0 %v850
  %899 = vmatprep.subr.mxu0 0.0
  %900 = vmatpush1.msra.mxu0 %v852
  %901 = vmatprep.subr.mxu0 0.0
  %902 = vmatpush1.msra.mxu0 %v854
  %903 = vmatprep.subr.mxu0 0.0
  %904 = vmatpush1.msra.mxu0 %v856
  %905 = vmatprep.subr.mxu0 0.0
  %906 = vmatpush1.msra.mxu0 %v858
  %907 = vmatprep.subr.mxu0 0.0
  %908 = vmatpush1.msra.mxu0 %v860
  %909 = vmatprep.subr.mxu0 0.0
  %910 = vmatpush1.msra.mxu0 %v862
  %911 = vmatprep.subr.mxu0 0.0
  %912 = vmatpush1.msra.mxu0 0.0
  %913 = vmatprep.subr.mxu0 0.0
  %914 = vmatpush1.msra.mxu0 0.0
  %915 = vmatprep.subr.mxu0 0.0
  %916 = vmatpush1.msra.mxu0 0.0
  %917 = vmatprep.subr.mxu0 0.0
  %918 = vmatpush1.msra.mxu0 0.0
  %919 = vmatprep.subr.mxu0 0.0
  %920 = vmatpush1.msra.mxu0 0.0
  %921 = vmatprep.subr.mxu0 0.0
  %922 = vmatpush1.msra.mxu0 0.0
  %923 = vmatprep.subr.mxu0 0.0
  %924 = vmatpush1.msra.mxu0 0.0
  %925 = vmatprep.subr.mxu0 0.0
  %926 = vmatpush1.msra.mxu0 0.0
  %927 = vmatprep.subr.mxu0 0.0
  %928 = vmatpush1.msra.mxu0 0.0
  %929 = vmatprep.subr.mxu0 0.0
  %930 = vmatpush1.msra.mxu0 0.0
  %931 = vmatprep.subr.mxu0 0.0
  %932 = vmatpush1.msra.mxu0 0.0
  %933 = vmatprep.subr.mxu0 0.0
  %934 = vmatpush1.msra.mxu0 0.0
  %935 = vmatprep.subr.mxu0 0.0
  %936 = vmatpush1.msra.mxu0 0.0
  %937 = vmatprep.subr.mxu0 0.0
  %938 = vmatpush1.msra.mxu0 0.0
  %939 = vmatprep.subr.mxu0 0.0
  %940 = vmatpush1.msra.mxu0 0.0
  %941 = vmatprep.subr.mxu0 0.0
  %942 = vmatpush1.msra.mxu0 0.0
  %943 = vmatprep.subr.mxu0 0.0
  %944 = vmatpush1.msra.mxu0 0.0
  %945 = vmatprep.subr.mxu0 0.0
  %946 = vmatpush1.msra.mxu0 0.0
  %947 = vmatprep.subr.mxu0 0.0
  %948 = vmatpush1.msra.mxu0 0.0
  %949 = vmatprep.subr.mxu0 0.0
  %950 = vmatpush1.msra.mxu0 0.0
  %951 = vmatprep.subr.mxu0 0.0
  %952 = vmatpush1.msra.mxu0 0.0
  %953 = vmatprep.subr.mxu0 0.0
  %954 = vmatpush1.msra.mxu0 0.0
  %955 = vmatprep.subr.mxu0 0.0
  %956 = vmatpush1.msra.mxu0 0.0
  %957 = vmatprep.subr.mxu0 0.0
  %958 = vmatpush1.msra.mxu0 0.0
  %959 = vmatprep.mubr.f32.mxu0 0.0
  %960 = vmatmul.mubr.f32.gmra.mrb[0].mxu0 %v872
  %v961 = vpop.f32.mrb[0].mxu0
  %v962 = vadd.f32 0.0, %v961
  %v963 = vpop.f32.mrb[0].mxu0
  %964 = vmatprep.mubr.f32.mxu0 0.0
  %965 = vmatmul.mubr.f32.gmra.mrb[0].mxu0 %v875
  %v966 = vpop.f32.mrb[0].mxu0
  %v967 = vadd.f32 0.0, %v966
  %v968 = vpop.f32.mrb[0].mxu0
  %969 = vmatprep.mubr.f32.mxu0 0.0
  %970 = vmatmul.mubr.f32.gmra.mrb[0].mxu0 %v878
  %v971 = vpop.f32.mrb[0].mxu0
  %v972 = vadd.f32 0.0, %v971
  %v973 = vpop.f32.mrb[0].mxu0
  %974 = vmatprep.mubr.f32.mxu0 0.0
  %975 = vmatmul.mubr.f32.gmra.mrb[0].mxu0 %v881
  %v976 = vpop.f32.mrb[0].mxu0
  %v977 = vadd.f32 0.0, %v976
  %v978 = vpop.f32.mrb[0].mxu0
  %979 = vmatprep.mubr.f32.mxu0 0.0
  %980 = vmatmul.mubr.f32.gmra.mrb[0].mxu0 %v884
  %v981 = vpop.f32.mrb[0].mxu0
  %v982 = vadd.f32 0.0, %v981
  %v983 = vpop.f32.mrb[0].mxu0
  %984 = vmatprep.mubr.f32.mxu0 0.0
  %985 = vmatmul.mubr.f32.gmra.mrb[0].mxu0 %v887
  %v986 = vpop.f32.mrb[0].mxu0
  %v987 = vadd.f32 0.0, %v986
  %v988 = vpop.f32.mrb[0].mxu0
  %989 = vmatprep.mubr.f32.mxu0 0.0
  %990 = vmatmul.mubr.f32.gmra.mrb[0].mxu0 %v890
  %v991 = vpop.f32.mrb[0].mxu0
  %v992 = vadd.f32 0.0, %v991
  %v993 = vpop.f32.mrb[0].mxu0
  %994 = vmatprep.mubr.f32.mxu0 0.0
  %995 = vmatmul.mubr.f32.gmra.mrb[0].mxu0 %v893
  %v996 = vpop.f32.mrb[0].mxu0
  %v997 = vadd.f32 0.0, %v996
  %v998 = vpop.f32.mrb[0].mxu0
  %999 = vdwg.mxu0
  %v1000 = vrcp.pop %v817
  %v1001 = vrcp.pop %v820
  %v1002 = vrcp.pop %v823
  %v1003 = vrcp.pop %v826
  %v1004 = vrcp.pop %v829
  %v1005 = vrcp.pop %v832
  %v1006 = vrcp.pop %v835
  %v1007 = vrcp.pop %v838
  %v1008 = vmul.f32 %v962, %v1000
  %v1009 = vmul.f32 %v967, %v1001
  %v1010 = vmul.f32 %v972, %v1002
  %v1011 = vmul.f32 %v977, %v1003
  %v1012 = vmul.f32 %v982, %v1004
  %v1013 = vmul.f32 %v987, %v1005
  %v1014 = vmul.f32 %v992, %v1006
  %v1015 = vmul.f32 %v997, %v1007
  %1016 = vrot.lane.b32.xlu0 %v681, 96
  %v1017 = vpop.permute.xlu0 %1016
  %v1019 = vadd.f32 %v1008, %v1017
  %v1020 = vadd.f32 %v1009, %v1017
  %v1021 = vadd.f32 %v1010, %v1017
  %v1022 = vadd.f32 %v1011, %v1017
  %v1023 = vadd.f32 %v1012, %v1017
  %v1024 = vadd.f32 %v1013, %v1017
  %v1025 = vadd.f32 %v1014, %v1017
  %v1026 = vadd.f32 %v1015, %v1017
  %v1027 = vmax.f32 %v1019, 0.0
  %v1028 = vmax.f32 %v1020, 0.0
  %v1029 = vmax.f32 %v1021, 0.0
  %v1030 = vmax.f32 %v1022, 0.0
  %v1031 = vmax.f32 %v1023, 0.0
  %v1032 = vmax.f32 %v1024, 0.0
  %v1033 = vmax.f32 %v1025, 0.0
  %v1034 = vmax.f32 %v1026, 0.0
  %1035 = vset.pattern.permute.xlu0 2
  %1036 = vperm.xlu0 %1035, %v345
  %v1037 = vpop.permute.xlu0 %1036
  %1039 = vset.pattern.permute.xlu0 2
  %1040 = vperm.xlu0 %1039, %v350
  %v1041 = vpop.permute.xlu0 %1040
  %1043 = vset.pattern.permute.xlu0 2
  %1044 = vperm.xlu0 %1043, %v355
  %v1045 = vpop.permute.xlu0 %1044
  %1047 = vset.pattern.permute.xlu0 2
  %1048 = vperm.xlu0 %1047, %v360
  %v1049 = vpop.permute.xlu0 %1048
  %1051 = vset.pattern.permute.xlu0 2
  %1052 = vperm.xlu0 %1051, %v365
  %v1053 = vpop.permute.xlu0 %1052
  %1055 = vset.pattern.permute.xlu0 2
  %1056 = vperm.xlu0 %1055, %v370
  %v1057 = vpop.permute.xlu0 %1056
  %1059 = vset.pattern.permute.xlu0 2
  %1060 = vperm.xlu0 %1059, %v375
  %v1061 = vpop.permute.xlu0 %1060
  %1063 = vset.pattern.permute.xlu0 2
  %1064 = vperm.xlu0 %1063, %v380
  %v1065 = vpop.permute.xlu0 %1064
  %v1067 = vlaneseq
  %v1068 = vshrl.u32 %v1067, 7
  %v1069 = vsub.s32 2, %v1068
  %v1070 = vrot.slane %v275, %v1069
  %v1071 = vadd.f32 %v1037, %v1070
  %v1072 = vadd.f32 %v1041, %v1070
  %v1073 = vadd.f32 %v1045, %v1070
  %v1074 = vadd.f32 %v1049, %v1070
  %v1075 = vadd.f32 %v1053, %v1070
  %v1076 = vadd.f32 %v1057, %v1070
  %v1077 = vadd.f32 %v1061, %v1070
  %v1078 = vadd.f32 %v1065, %v1070
  %v1079 = vmul.f32 %v1071, 0.2
  %v1080 = vmul.f32 %v1072, 0.2
  %v1081 = vmul.f32 %v1073, 0.2
  %v1082 = vmul.f32 %v1074, 0.2
  %v1083 = vmul.f32 %v1075, 0.2
  %v1084 = vmul.f32 %v1076, 0.2
  %v1085 = vmul.f32 %v1077, 0.2
  %v1086 = vmul.f32 %v1078, 0.2
  %v1087 = vmax.f32 %v1071, %v1079
  %v1088 = vmax.f32 %v1072, %v1080
  %v1089 = vmax.f32 %v1073, %v1081
  %v1090 = vmax.f32 %v1074, %v1082
  %v1091 = vmax.f32 %v1075, %v1083
  %v1092 = vmax.f32 %v1076, %v1084
  %v1093 = vmax.f32 %v1077, %v1085
  %v1094 = vmax.f32 %v1078, %v1086
  %v1095 = vadd.f32 %v1087, %v65
  %v1096 = vadd.f32 %v1088, %v66
  %v1097 = vadd.f32 %v1089, %v67
  %v1098 = vadd.f32 %v1090, %v68
  %v1099 = vadd.f32 %v1091, %v69
  %v1100 = vadd.f32 %v1092, %v70
  %v1101 = vadd.f32 %v1093, %v71
  %v1102 = vadd.f32 %v1094, %v72
  %v1103 = vsel %vm459, %v1095, -inf
  %1104 = vmax.xlane.f32.xlu0 %v1103
  %v1105 = vpop.xlane.xlu0 %1104
  %v1106 = vsel %vm459, %v1096, -inf
  %1107 = vmax.xlane.f32.xlu0 %v1106
  %v1108 = vpop.xlane.xlu0 %1107
  %v1109 = vsel %vm459, %v1097, -inf
  %1110 = vmax.xlane.f32.xlu0 %v1109
  %v1111 = vpop.xlane.xlu0 %1110
  %v1112 = vsel %vm459, %v1098, -inf
  %1113 = vmax.xlane.f32.xlu0 %v1112
  %v1114 = vpop.xlane.xlu0 %1113
  %v1115 = vsel %vm459, %v1099, -inf
  %1116 = vmax.xlane.f32.xlu0 %v1115
  %v1117 = vpop.xlane.xlu0 %1116
  %v1118 = vsel %vm459, %v1100, -inf
  %1119 = vmax.xlane.f32.xlu0 %v1118
  %v1120 = vpop.xlane.xlu0 %1119
  %v1121 = vsel %vm459, %v1101, -inf
  %1122 = vmax.xlane.f32.xlu0 %v1121
  %v1123 = vpop.xlane.xlu0 %1122
  %v1124 = vsel %vm459, %v1102, -inf
  %1125 = vmax.xlane.f32.xlu0 %v1124
  %v1126 = vpop.xlane.xlu0 %1125
  %v1127 = vsub.f32 %v1095, %v1105
  %v1128 = vsub.f32 %v1096, %v1108
  %v1129 = vsub.f32 %v1097, %v1111
  %v1130 = vsub.f32 %v1098, %v1114
  %v1131 = vsub.f32 %v1099, %v1117
  %v1132 = vsub.f32 %v1100, %v1120
  %v1133 = vsub.f32 %v1101, %v1123
  %v1134 = vsub.f32 %v1102, %v1126
  %v1135 = vmul.f32 %v1127, 1.442695
  %v1136 = vpow.pop %v1135
  %v1137 = vmul.f32 %v1128, 1.442695
  %v1138 = vpow.pop %v1137
  %v1139 = vmul.f32 %v1129, 1.442695
  %v1140 = vpow.pop %v1139
  %v1141 = vmul.f32 %v1130, 1.442695
  %v1142 = vpow.pop %v1141
  %v1143 = vmul.f32 %v1131, 1.442695
  %v1144 = vpow.pop %v1143
  %v1145 = vmul.f32 %v1132, 1.442695
  %v1146 = vpow.pop %v1145
  %v1147 = vmul.f32 %v1133, 1.442695
  %v1148 = vpow.pop %v1147
  %v1149 = vmul.f32 %v1134, 1.442695
  %v1150 = vpow.pop %v1149
  %v1151 = vsel %vm459, %v1136, 0.0
  %1152 = vadd.xlane.f32.xlu0 %v1151
  %v1153 = vpop.xlane.xlu0 %1152
  %v1154 = vsel %vm459, %v1138, 0.0
  %1155 = vadd.xlane.f32.xlu0 %v1154
  %v1156 = vpop.xlane.xlu0 %1155
  %v1157 = vsel %vm459, %v1140, 0.0
  %1158 = vadd.xlane.f32.xlu0 %v1157
  %v1159 = vpop.xlane.xlu0 %1158
  %v1160 = vsel %vm459, %v1142, 0.0
  %1161 = vadd.xlane.f32.xlu0 %v1160
  %v1162 = vpop.xlane.xlu0 %1161
  %v1163 = vsel %vm459, %v1144, 0.0
  %1164 = vadd.xlane.f32.xlu0 %v1163
  %v1165 = vpop.xlane.xlu0 %1164
  %v1166 = vsel %vm459, %v1146, 0.0
  %1167 = vadd.xlane.f32.xlu0 %v1166
  %v1168 = vpop.xlane.xlu0 %1167
  %v1169 = vsel %vm459, %v1148, 0.0
  %1170 = vadd.xlane.f32.xlu0 %v1169
  %v1171 = vpop.xlane.xlu0 %1170
  %v1172 = vsel %vm459, %v1150, 0.0
  %1173 = vadd.xlane.f32.xlu0 %v1172
  %v1174 = vpop.xlane.xlu0 %1173
  %1175 = vrot.lane.b32.xlu0 %v170, 64
  %v1176 = vpop.permute.xlu0 %1175
  %1177 = vrot.lane.b32.xlu0 %v175, 64
  %v1178 = vpop.permute.xlu0 %1177
  %1179 = vrot.lane.b32.xlu0 %v180, 64
  %v1180 = vpop.permute.xlu0 %1179
  %1181 = vrot.lane.b32.xlu0 %v185, 64
  %v1182 = vpop.permute.xlu0 %1181
  %1183 = vrot.lane.b32.xlu0 %v190, 64
  %v1184 = vpop.permute.xlu0 %1183
  %1185 = vrot.lane.b32.xlu0 %v195, 64
  %v1186 = vpop.permute.xlu0 %1185
  %1187 = vrot.lane.b32.xlu0 %v200, 64
  %v1188 = vpop.permute.xlu0 %1187
  %1189 = vrot.lane.b32.xlu0 %v205, 64
  %v1190 = vpop.permute.xlu0 %1189
  %v1200 = vsel %vm459, %v1136, 0
  %v1203 = vsel %vm459, %v1138, 0
  %v1206 = vsel %vm459, %v1140, 0
  %v1209 = vsel %vm459, %v1142, 0
  %v1212 = vsel %vm459, %v1144, 0
  %v1215 = vsel %vm459, %v1146, 0
  %v1218 = vsel %vm459, %v1148, 0
  %v1221 = vsel %vm459, %v1150, 0
  %1223 = vmatprep.subr.mxu0 0.0
  %1224 = vmatpush1.msra.mxu0 %v1176
  %1225 = vmatprep.subr.mxu0 0.0
  %1226 = vmatpush1.msra.mxu0 %v1178
  %1227 = vmatprep.subr.mxu0 0.0
  %1228 = vmatpush1.msra.mxu0 %v1180
  %1229 = vmatprep.subr.mxu0 0.0
  %1230 = vmatpush1.msra.mxu0 %v1182
  %1231 = vmatprep.subr.mxu0 0.0
  %1232 = vmatpush1.msra.mxu0 %v1184
  %1233 = vmatprep.subr.mxu0 0.0
  %1234 = vmatpush1.msra.mxu0 %v1186
  %1235 = vmatprep.subr.mxu0 0.0
  %1236 = vmatpush1.msra.mxu0 %v1188
  %1237 = vmatprep.subr.mxu0 0.0
  %1238 = vmatpush1.msra.mxu0 %v1190
  %1239 = vmatprep.subr.mxu0 0.0
  %1240 = vmatpush1.msra.mxu0 0.0
  %1241 = vmatprep.subr.mxu0 0.0
  %1242 = vmatpush1.msra.mxu0 0.0
  %1243 = vmatprep.subr.mxu0 0.0
  %1244 = vmatpush1.msra.mxu0 0.0
  %1245 = vmatprep.subr.mxu0 0.0
  %1246 = vmatpush1.msra.mxu0 0.0
  %1247 = vmatprep.subr.mxu0 0.0
  %1248 = vmatpush1.msra.mxu0 0.0
  %1249 = vmatprep.subr.mxu0 0.0
  %1250 = vmatpush1.msra.mxu0 0.0
  %1251 = vmatprep.subr.mxu0 0.0
  %1252 = vmatpush1.msra.mxu0 0.0
  %1253 = vmatprep.subr.mxu0 0.0
  %1254 = vmatpush1.msra.mxu0 0.0
  %1255 = vmatprep.subr.mxu0 0.0
  %1256 = vmatpush1.msra.mxu0 0.0
  %1257 = vmatprep.subr.mxu0 0.0
  %1258 = vmatpush1.msra.mxu0 0.0
  %1259 = vmatprep.subr.mxu0 0.0
  %1260 = vmatpush1.msra.mxu0 0.0
  %1261 = vmatprep.subr.mxu0 0.0
  %1262 = vmatpush1.msra.mxu0 0.0
  %1263 = vmatprep.subr.mxu0 0.0
  %1264 = vmatpush1.msra.mxu0 0.0
  %1265 = vmatprep.subr.mxu0 0.0
  %1266 = vmatpush1.msra.mxu0 0.0
  %1267 = vmatprep.subr.mxu0 0.0
  %1268 = vmatpush1.msra.mxu0 0.0
  %1269 = vmatprep.subr.mxu0 0.0
  %1270 = vmatpush1.msra.mxu0 0.0
  %1271 = vmatprep.subr.mxu0 0.0
  %1272 = vmatpush1.msra.mxu0 0.0
  %1273 = vmatprep.subr.mxu0 0.0
  %1274 = vmatpush1.msra.mxu0 0.0
  %1275 = vmatprep.subr.mxu0 0.0
  %1276 = vmatpush1.msra.mxu0 0.0
  %1277 = vmatprep.subr.mxu0 0.0
  %1278 = vmatpush1.msra.mxu0 0.0
  %1279 = vmatprep.subr.mxu0 0.0
  %1280 = vmatpush1.msra.mxu0 0.0
  %1281 = vmatprep.subr.mxu0 0.0
  %1282 = vmatpush1.msra.mxu0 0.0
  %1283 = vmatprep.subr.mxu0 0.0
  %1284 = vmatpush1.msra.mxu0 0.0
  %1285 = vmatprep.subr.mxu0 0.0
  %1286 = vmatpush1.msra.mxu0 0.0
  %1287 = vmatprep.mubr.f32.mxu0 0.0
  %1288 = vmatmul.mubr.f32.gmra.mrb[0].mxu0 %v1200
  %v1289 = vpop.f32.mrb[0].mxu0
  %v1290 = vadd.f32 0.0, %v1289
  %v1291 = vpop.f32.mrb[0].mxu0
  %1292 = vmatprep.mubr.f32.mxu0 0.0
  %1293 = vmatmul.mubr.f32.gmra.mrb[0].mxu0 %v1203
  %v1294 = vpop.f32.mrb[0].mxu0
  %v1295 = vadd.f32 0.0, %v1294
  %v1296 = vpop.f32.mrb[0].mxu0
  %1297 = vmatprep.mubr.f32.mxu0 0.0
  %1298 = vmatmul.mubr.f32.gmra.mrb[0].mxu0 %v1206
  %v1299 = vpop.f32.mrb[0].mxu0
  %v1300 = vadd.f32 0.0, %v1299
  %v1301 = vpop.f32.mrb[0].mxu0
  %1302 = vmatprep.mubr.f32.mxu0 0.0
  %1303 = vmatmul.mubr.f32.gmra.mrb[0].mxu0 %v1209
  %v1304 = vpop.f32.mrb[0].mxu0
  %v1305 = vadd.f32 0.0, %v1304
  %v1306 = vpop.f32.mrb[0].mxu0
  %1307 = vmatprep.mubr.f32.mxu0 0.0
  %1308 = vmatmul.mubr.f32.gmra.mrb[0].mxu0 %v1212
  %v1309 = vpop.f32.mrb[0].mxu0
  %v1310 = vadd.f32 0.0, %v1309
  %v1311 = vpop.f32.mrb[0].mxu0
  %1312 = vmatprep.mubr.f32.mxu0 0.0
  %1313 = vmatmul.mubr.f32.gmra.mrb[0].mxu0 %v1215
  %v1314 = vpop.f32.mrb[0].mxu0
  %v1315 = vadd.f32 0.0, %v1314
  %v1316 = vpop.f32.mrb[0].mxu0
  %1317 = vmatprep.mubr.f32.mxu0 0.0
  %1318 = vmatmul.mubr.f32.gmra.mrb[0].mxu0 %v1218
  %v1319 = vpop.f32.mrb[0].mxu0
  %v1320 = vadd.f32 0.0, %v1319
  %v1321 = vpop.f32.mrb[0].mxu0
  %1322 = vmatprep.mubr.f32.mxu0 0.0
  %1323 = vmatmul.mubr.f32.gmra.mrb[0].mxu0 %v1221
  %v1324 = vpop.f32.mrb[0].mxu0
  %v1325 = vadd.f32 0.0, %v1324
  %v1326 = vpop.f32.mrb[0].mxu0
  %1327 = vdwg.mxu0
  %v1328 = vrcp.pop %v1153
  %v1329 = vrcp.pop %v1156
  %v1330 = vrcp.pop %v1159
  %v1331 = vrcp.pop %v1162
  %v1332 = vrcp.pop %v1165
  %v1333 = vrcp.pop %v1168
  %v1334 = vrcp.pop %v1171
  %v1335 = vrcp.pop %v1174
  %v1336 = vmul.f32 %v1290, %v1328
  %v1337 = vmul.f32 %v1295, %v1329
  %v1338 = vmul.f32 %v1300, %v1330
  %v1339 = vmul.f32 %v1305, %v1331
  %v1340 = vmul.f32 %v1310, %v1332
  %v1341 = vmul.f32 %v1315, %v1333
  %v1342 = vmul.f32 %v1320, %v1334
  %v1343 = vmul.f32 %v1325, %v1335
  %1344 = vrot.lane.b32.xlu0 %v681, 64
  %v1345 = vpop.permute.xlu0 %1344
  %v1347 = vadd.f32 %v1336, %v1345
  %v1348 = vadd.f32 %v1337, %v1345
  %v1349 = vadd.f32 %v1338, %v1345
  %v1350 = vadd.f32 %v1339, %v1345
  %v1351 = vadd.f32 %v1340, %v1345
  %v1352 = vadd.f32 %v1341, %v1345
  %v1353 = vadd.f32 %v1342, %v1345
  %v1354 = vadd.f32 %v1343, %v1345
  %v1355 = vmax.f32 %v1347, 0.0
  %v1356 = vmax.f32 %v1348, 0.0
  %v1357 = vmax.f32 %v1349, 0.0
  %v1358 = vmax.f32 %v1350, 0.0
  %v1359 = vmax.f32 %v1351, 0.0
  %v1360 = vmax.f32 %v1352, 0.0
  %v1361 = vmax.f32 %v1353, 0.0
  %v1362 = vmax.f32 %v1354, 0.0
  %1363 = vset.pattern.permute.xlu0 3
  %1364 = vperm.xlu0 %1363, %v345
  %v1365 = vpop.permute.xlu0 %1364
  %1367 = vset.pattern.permute.xlu0 3
  %1368 = vperm.xlu0 %1367, %v350
  %v1369 = vpop.permute.xlu0 %1368
  %1371 = vset.pattern.permute.xlu0 3
  %1372 = vperm.xlu0 %1371, %v355
  %v1373 = vpop.permute.xlu0 %1372
  %1375 = vset.pattern.permute.xlu0 3
  %1376 = vperm.xlu0 %1375, %v360
  %v1377 = vpop.permute.xlu0 %1376
  %1379 = vset.pattern.permute.xlu0 3
  %1380 = vperm.xlu0 %1379, %v365
  %v1381 = vpop.permute.xlu0 %1380
  %1383 = vset.pattern.permute.xlu0 3
  %1384 = vperm.xlu0 %1383, %v370
  %v1385 = vpop.permute.xlu0 %1384
  %1387 = vset.pattern.permute.xlu0 3
  %1388 = vperm.xlu0 %1387, %v375
  %v1389 = vpop.permute.xlu0 %1388
  %1391 = vset.pattern.permute.xlu0 3
  %1392 = vperm.xlu0 %1391, %v380
  %v1393 = vpop.permute.xlu0 %1392
  %v1395 = vlaneseq
  %v1396 = vshrl.u32 %v1395, 7
  %v1397 = vsub.s32 3, %v1396
  %v1398 = vrot.slane %v275, %v1397
  %v1399 = vadd.f32 %v1365, %v1398
  %v1400 = vadd.f32 %v1369, %v1398
  %v1401 = vadd.f32 %v1373, %v1398
  %v1402 = vadd.f32 %v1377, %v1398
  %v1403 = vadd.f32 %v1381, %v1398
  %v1404 = vadd.f32 %v1385, %v1398
  %v1405 = vadd.f32 %v1389, %v1398
  %v1406 = vadd.f32 %v1393, %v1398
  %v1407 = vmul.f32 %v1399, 0.2
  %v1408 = vmul.f32 %v1400, 0.2
  %v1409 = vmul.f32 %v1401, 0.2
  %v1410 = vmul.f32 %v1402, 0.2
  %v1411 = vmul.f32 %v1403, 0.2
  %v1412 = vmul.f32 %v1404, 0.2
  %v1413 = vmul.f32 %v1405, 0.2
  %v1414 = vmul.f32 %v1406, 0.2
  %v1415 = vmax.f32 %v1399, %v1407
  %v1416 = vmax.f32 %v1400, %v1408
  %v1417 = vmax.f32 %v1401, %v1409
  %v1418 = vmax.f32 %v1402, %v1410
  %v1419 = vmax.f32 %v1403, %v1411
  %v1420 = vmax.f32 %v1404, %v1412
  %v1421 = vmax.f32 %v1405, %v1413
  %v1422 = vmax.f32 %v1406, %v1414
  %v1423 = vadd.f32 %v1415, %v65
  %v1424 = vadd.f32 %v1416, %v66
  %v1425 = vadd.f32 %v1417, %v67
  %v1426 = vadd.f32 %v1418, %v68
  %v1427 = vadd.f32 %v1419, %v69
  %v1428 = vadd.f32 %v1420, %v70
  %v1429 = vadd.f32 %v1421, %v71
  %v1430 = vadd.f32 %v1422, %v72
  %v1431 = vsel %vm459, %v1423, -inf
  %1432 = vmax.xlane.f32.xlu0 %v1431
  %v1433 = vpop.xlane.xlu0 %1432
  %v1434 = vsel %vm459, %v1424, -inf
  %1435 = vmax.xlane.f32.xlu0 %v1434
  %v1436 = vpop.xlane.xlu0 %1435
  %v1437 = vsel %vm459, %v1425, -inf
  %1438 = vmax.xlane.f32.xlu0 %v1437
  %v1439 = vpop.xlane.xlu0 %1438
  %v1440 = vsel %vm459, %v1426, -inf
  %1441 = vmax.xlane.f32.xlu0 %v1440
  %v1442 = vpop.xlane.xlu0 %1441
  %v1443 = vsel %vm459, %v1427, -inf
  %1444 = vmax.xlane.f32.xlu0 %v1443
  %v1445 = vpop.xlane.xlu0 %1444
  %v1446 = vsel %vm459, %v1428, -inf
  %1447 = vmax.xlane.f32.xlu0 %v1446
  %v1448 = vpop.xlane.xlu0 %1447
  %v1449 = vsel %vm459, %v1429, -inf
  %1450 = vmax.xlane.f32.xlu0 %v1449
  %v1451 = vpop.xlane.xlu0 %1450
  %v1452 = vsel %vm459, %v1430, -inf
  %1453 = vmax.xlane.f32.xlu0 %v1452
  %v1454 = vpop.xlane.xlu0 %1453
  %v1455 = vsub.f32 %v1423, %v1433
  %v1456 = vsub.f32 %v1424, %v1436
  %v1457 = vsub.f32 %v1425, %v1439
  %v1458 = vsub.f32 %v1426, %v1442
  %v1459 = vsub.f32 %v1427, %v1445
  %v1460 = vsub.f32 %v1428, %v1448
  %v1461 = vsub.f32 %v1429, %v1451
  %v1462 = vsub.f32 %v1430, %v1454
  %v1463 = vmul.f32 %v1455, 1.442695
  %v1464 = vpow.pop %v1463
  %v1465 = vmul.f32 %v1456, 1.442695
  %v1466 = vpow.pop %v1465
  %v1467 = vmul.f32 %v1457, 1.442695
  %v1468 = vpow.pop %v1467
  %v1469 = vmul.f32 %v1458, 1.442695
  %v1470 = vpow.pop %v1469
  %v1471 = vmul.f32 %v1459, 1.442695
  %v1472 = vpow.pop %v1471
  %v1473 = vmul.f32 %v1460, 1.442695
  %v1474 = vpow.pop %v1473
  %v1475 = vmul.f32 %v1461, 1.442695
  %v1476 = vpow.pop %v1475
  %v1477 = vmul.f32 %v1462, 1.442695
  %v1478 = vpow.pop %v1477
  %v1479 = vsel %vm459, %v1464, 0.0
  %1480 = vadd.xlane.f32.xlu0 %v1479
  %v1481 = vpop.xlane.xlu0 %1480
  %v1482 = vsel %vm459, %v1466, 0.0
  %1483 = vadd.xlane.f32.xlu0 %v1482
  %v1484 = vpop.xlane.xlu0 %1483
  %v1485 = vsel %vm459, %v1468, 0.0
  %1486 = vadd.xlane.f32.xlu0 %v1485
  %v1487 = vpop.xlane.xlu0 %1486
  %v1488 = vsel %vm459, %v1470, 0.0
  %1489 = vadd.xlane.f32.xlu0 %v1488
  %v1490 = vpop.xlane.xlu0 %1489
  %v1491 = vsel %vm459, %v1472, 0.0
  %1492 = vadd.xlane.f32.xlu0 %v1491
  %v1493 = vpop.xlane.xlu0 %1492
  %v1494 = vsel %vm459, %v1474, 0.0
  %1495 = vadd.xlane.f32.xlu0 %v1494
  %v1496 = vpop.xlane.xlu0 %1495
  %v1497 = vsel %vm459, %v1476, 0.0
  %1498 = vadd.xlane.f32.xlu0 %v1497
  %v1499 = vpop.xlane.xlu0 %1498
  %v1500 = vsel %vm459, %v1478, 0.0
  %1501 = vadd.xlane.f32.xlu0 %v1500
  %v1502 = vpop.xlane.xlu0 %1501
  %1503 = vrot.lane.b32.xlu0 %v170, 32
  %v1504 = vpop.permute.xlu0 %1503
  %1505 = vrot.lane.b32.xlu0 %v175, 32
  %v1506 = vpop.permute.xlu0 %1505
  %1507 = vrot.lane.b32.xlu0 %v180, 32
  %v1508 = vpop.permute.xlu0 %1507
  %1509 = vrot.lane.b32.xlu0 %v185, 32
  %v1510 = vpop.permute.xlu0 %1509
  %1511 = vrot.lane.b32.xlu0 %v190, 32
  %v1512 = vpop.permute.xlu0 %1511
  %1513 = vrot.lane.b32.xlu0 %v195, 32
  %v1514 = vpop.permute.xlu0 %1513
  %1515 = vrot.lane.b32.xlu0 %v200, 32
  %v1516 = vpop.permute.xlu0 %1515
  %1517 = vrot.lane.b32.xlu0 %v205, 32
  %v1518 = vpop.permute.xlu0 %1517
  %v1528 = vsel %vm459, %v1464, 0
  %v1531 = vsel %vm459, %v1466, 0
  %v1534 = vsel %vm459, %v1468, 0
  %v1537 = vsel %vm459, %v1470, 0
  %v1540 = vsel %vm459, %v1472, 0
  %v1543 = vsel %vm459, %v1474, 0
  %v1546 = vsel %vm459, %v1476, 0
  %v1549 = vsel %vm459, %v1478, 0
  %1551 = vmatprep.subr.mxu0 0.0
  %1552 = vmatpush1.msra.mxu0 %v1504
  %1553 = vmatprep.subr.mxu0 0.0
  %1554 = vmatpush1.msra.mxu0 %v1506
  %1555 = vmatprep.subr.mxu0 0.0
  %1556 = vmatpush1.msra.mxu0 %v1508
  %1557 = vmatprep.subr.mxu0 0.0
  %1558 = vmatpush1.msra.mxu0 %v1510
  %1559 = vmatprep.subr.mxu0 0.0
  %1560 = vmatpush1.msra.mxu0 %v1512
  %1561 = vmatprep.subr.mxu0 0.0
  %1562 = vmatpush1.msra.mxu0 %v1514
  %1563 = vmatprep.subr.mxu0 0.0
  %1564 = vmatpush1.msra.mxu0 %v1516
  %1565 = vmatprep.subr.mxu0 0.0
  %1566 = vmatpush1.msra.mxu0 %v1518
  %1567 = vmatprep.subr.mxu0 0.0
  %1568 = vmatpush1.msra.mxu0 0.0
  %1569 = vmatprep.subr.mxu0 0.0
  %1570 = vmatpush1.msra.mxu0 0.0
  %1571 = vmatprep.subr.mxu0 0.0
  %1572 = vmatpush1.msra.mxu0 0.0
  %1573 = vmatprep.subr.mxu0 0.0
  %1574 = vmatpush1.msra.mxu0 0.0
  %1575 = vmatprep.subr.mxu0 0.0
  %1576 = vmatpush1.msra.mxu0 0.0
  %1577 = vmatprep.subr.mxu0 0.0
  %1578 = vmatpush1.msra.mxu0 0.0
  %1579 = vmatprep.subr.mxu0 0.0
  %1580 = vmatpush1.msra.mxu0 0.0
  %1581 = vmatprep.subr.mxu0 0.0
  %1582 = vmatpush1.msra.mxu0 0.0
  %1583 = vmatprep.subr.mxu0 0.0
  %1584 = vmatpush1.msra.mxu0 0.0
  %1585 = vmatprep.subr.mxu0 0.0
  %1586 = vmatpush1.msra.mxu0 0.0
  %1587 = vmatprep.subr.mxu0 0.0
  %1588 = vmatpush1.msra.mxu0 0.0
  %1589 = vmatprep.subr.mxu0 0.0
  %1590 = vmatpush1.msra.mxu0 0.0
  %1591 = vmatprep.subr.mxu0 0.0
  %1592 = vmatpush1.msra.mxu0 0.0
  %1593 = vmatprep.subr.mxu0 0.0
  %1594 = vmatpush1.msra.mxu0 0.0
  %1595 = vmatprep.subr.mxu0 0.0
  %1596 = vmatpush1.msra.mxu0 0.0
  %1597 = vmatprep.subr.mxu0 0.0
  %1598 = vmatpush1.msra.mxu0 0.0
  %1599 = vmatprep.subr.mxu0 0.0
  %1600 = vmatpush1.msra.mxu0 0.0
  %1601 = vmatprep.subr.mxu0 0.0
  %1602 = vmatpush1.msra.mxu0 0.0
  %1603 = vmatprep.subr.mxu0 0.0
  %1604 = vmatpush1.msra.mxu0 0.0
  %1605 = vmatprep.subr.mxu0 0.0
  %1606 = vmatpush1.msra.mxu0 0.0
  %1607 = vmatprep.subr.mxu0 0.0
  %1608 = vmatpush1.msra.mxu0 0.0
  %1609 = vmatprep.subr.mxu0 0.0
  %1610 = vmatpush1.msra.mxu0 0.0
  %1611 = vmatprep.subr.mxu0 0.0
  %1612 = vmatpush1.msra.mxu0 0.0
  %1613 = vmatprep.subr.mxu0 0.0
  %1614 = vmatpush1.msra.mxu0 0.0
  %1615 = vmatprep.mubr.f32.mxu0 0.0
  %1616 = vmatmul.mubr.f32.gmra.mrb[0].mxu0 %v1528
  %v1617 = vpop.f32.mrb[0].mxu0
  %v1618 = vadd.f32 0.0, %v1617
  %v1619 = vpop.f32.mrb[0].mxu0
  %1620 = vmatprep.mubr.f32.mxu0 0.0
  %1621 = vmatmul.mubr.f32.gmra.mrb[0].mxu0 %v1531
  %v1622 = vpop.f32.mrb[0].mxu0
  %v1623 = vadd.f32 0.0, %v1622
  %v1624 = vpop.f32.mrb[0].mxu0
  %1625 = vmatprep.mubr.f32.mxu0 0.0
  %1626 = vmatmul.mubr.f32.gmra.mrb[0].mxu0 %v1534
  %v1627 = vpop.f32.mrb[0].mxu0
  %v1628 = vadd.f32 0.0, %v1627
  %v1629 = vpop.f32.mrb[0].mxu0
  %1630 = vmatprep.mubr.f32.mxu0 0.0
  %1631 = vmatmul.mubr.f32.gmra.mrb[0].mxu0 %v1537
  %v1632 = vpop.f32.mrb[0].mxu0
  %v1633 = vadd.f32 0.0, %v1632
  %v1634 = vpop.f32.mrb[0].mxu0
  %1635 = vmatprep.mubr.f32.mxu0 0.0
  %1636 = vmatmul.mubr.f32.gmra.mrb[0].mxu0 %v1540
  %v1637 = vpop.f32.mrb[0].mxu0
  %v1638 = vadd.f32 0.0, %v1637
  %v1639 = vpop.f32.mrb[0].mxu0
  %1640 = vmatprep.mubr.f32.mxu0 0.0
  %1641 = vmatmul.mubr.f32.gmra.mrb[0].mxu0 %v1543
  %v1642 = vpop.f32.mrb[0].mxu0
  %v1643 = vadd.f32 0.0, %v1642
  %v1644 = vpop.f32.mrb[0].mxu0
  %1645 = vmatprep.mubr.f32.mxu0 0.0
  %1646 = vmatmul.mubr.f32.gmra.mrb[0].mxu0 %v1546
  %v1647 = vpop.f32.mrb[0].mxu0
  %v1648 = vadd.f32 0.0, %v1647
  %v1649 = vpop.f32.mrb[0].mxu0
  %1650 = vmatprep.mubr.f32.mxu0 0.0
  %1651 = vmatmul.mubr.f32.gmra.mrb[0].mxu0 %v1549
  %v1652 = vpop.f32.mrb[0].mxu0
  %v1653 = vadd.f32 0.0, %v1652
  %v1654 = vpop.f32.mrb[0].mxu0
  %1655 = vdwg.mxu0
  %v1656 = vrcp.pop %v1481
  %v1657 = vrcp.pop %v1484
  %v1658 = vrcp.pop %v1487
  %v1659 = vrcp.pop %v1490
  %v1660 = vrcp.pop %v1493
  %v1661 = vrcp.pop %v1496
  %v1662 = vrcp.pop %v1499
  %v1663 = vrcp.pop %v1502
  %v1664 = vmul.f32 %v1618, %v1656
  %v1665 = vmul.f32 %v1623, %v1657
  %v1666 = vmul.f32 %v1628, %v1658
  %v1667 = vmul.f32 %v1633, %v1659
  %v1668 = vmul.f32 %v1638, %v1660
  %v1669 = vmul.f32 %v1643, %v1661
  %v1670 = vmul.f32 %v1648, %v1662
  %v1671 = vmul.f32 %v1653, %v1663
  %1672 = vrot.lane.b32.xlu0 %v681, 32
  %v1673 = vpop.permute.xlu0 %1672
  %v1675 = vadd.f32 %v1664, %v1673
  %v1676 = vadd.f32 %v1665, %v1673
  %v1677 = vadd.f32 %v1666, %v1673
  %v1678 = vadd.f32 %v1667, %v1673
  %v1679 = vadd.f32 %v1668, %v1673
  %v1680 = vadd.f32 %v1669, %v1673
  %v1681 = vadd.f32 %v1670, %v1673
  %v1682 = vadd.f32 %v1671, %v1673
  %v1683 = vmax.f32 %v1675, 0.0
  %v1684 = vmax.f32 %v1676, 0.0
  %v1685 = vmax.f32 %v1677, 0.0
  %v1686 = vmax.f32 %v1678, 0.0
  %v1687 = vmax.f32 %v1679, 0.0
  %v1688 = vmax.f32 %v1680, 0.0
  %v1689 = vmax.f32 %v1681, 0.0
  %v1690 = vmax.f32 %v1682, 0.0
  %1699 = vrot.lane.b32.xlu0 %v1027, 32
  %v1700 = vpop.permute.xlu0 %1699
  %1701 = vrot.lane.b32.xlu0 %v1028, 32
  %v1702 = vpop.permute.xlu0 %1701
  %1703 = vrot.lane.b32.xlu0 %v1029, 32
  %v1704 = vpop.permute.xlu0 %1703
  %1705 = vrot.lane.b32.xlu0 %v1030, 32
  %v1706 = vpop.permute.xlu0 %1705
  %1707 = vrot.lane.b32.xlu0 %v1031, 32
  %v1708 = vpop.permute.xlu0 %1707
  %1709 = vrot.lane.b32.xlu0 %v1032, 32
  %v1710 = vpop.permute.xlu0 %1709
  %1711 = vrot.lane.b32.xlu0 %v1033, 32
  %v1712 = vpop.permute.xlu0 %1711
  %1713 = vrot.lane.b32.xlu0 %v1034, 32
  %v1714 = vpop.permute.xlu0 %1713
  %1731 = vrot.lane.b32.xlu0 %v1355, 64
  %v1732 = vpop.permute.xlu0 %1731
  %1733 = vrot.lane.b32.xlu0 %v1356, 64
  %v1734 = vpop.permute.xlu0 %1733
  %1735 = vrot.lane.b32.xlu0 %v1357, 64
  %v1736 = vpop.permute.xlu0 %1735
  %1737 = vrot.lane.b32.xlu0 %v1358, 64
  %v1738 = vpop.permute.xlu0 %1737
  %1739 = vrot.lane.b32.xlu0 %v1359, 64
  %v1740 = vpop.permute.xlu0 %1739
  %1741 = vrot.lane.b32.xlu0 %v1360, 64
  %v1742 = vpop.permute.xlu0 %1741
  %1743 = vrot.lane.b32.xlu0 %v1361, 64
  %v1744 = vpop.permute.xlu0 %1743
  %1745 = vrot.lane.b32.xlu0 %v1362, 64
  %v1746 = vpop.permute.xlu0 %1745
  %1763 = vrot.lane.b32.xlu0 %v1683, 96
  %v1764 = vpop.permute.xlu0 %1763
  %1765 = vrot.lane.b32.xlu0 %v1684, 96
  %v1766 = vpop.permute.xlu0 %1765
  %1767 = vrot.lane.b32.xlu0 %v1685, 96
  %v1768 = vpop.permute.xlu0 %1767
  %1769 = vrot.lane.b32.xlu0 %v1686, 96
  %v1770 = vpop.permute.xlu0 %1769
  %1771 = vrot.lane.b32.xlu0 %v1687, 96
  %v1772 = vpop.permute.xlu0 %1771
  %1773 = vrot.lane.b32.xlu0 %v1688, 96
  %v1774 = vpop.permute.xlu0 %1773
  %1775 = vrot.lane.b32.xlu0 %v1689, 96
  %v1776 = vpop.permute.xlu0 %1775
  %1777 = vrot.lane.b32.xlu0 %v1690, 96
  %v1778 = vpop.permute.xlu0 %1777
  %vm1787 = vcmask 261120
  %v1788 = vsel %vm1787, %v691, %v1700
  %v1789 = vsel %vm1787, %v692, %v1702
  %v1790 = vsel %vm1787, %v693, %v1704
  %v1791 = vsel %vm1787, %v694, %v1706
  %v1792 = vsel %vm1787, %v695, %v1708
  %v1793 = vsel %vm1787, %v696, %v1710
  %v1794 = vsel %vm1787, %v697, %v1712
  %v1795 = vsel %vm1787, %v698, %v1714
  %v1796 = vsel %vm459, %v1788, %v1732
  %v1797 = vsel %vm459, %v1789, %v1734
  %v1798 = vsel %vm459, %v1790, %v1736
  %v1799 = vsel %vm459, %v1791, %v1738
  %v1800 = vsel %vm459, %v1792, %v1740
  %v1801 = vsel %vm459, %v1793, %v1742
  %v1802 = vsel %vm459, %v1794, %v1744
  %v1803 = vsel %vm459, %v1795, %v1746
  %vm1804 = vcmask 785408
  %v1805 = vsel %vm1804, %v1796, %v1764
  %v1806 = vsel %vm1804, %v1797, %v1766
  %v1807 = vsel %vm1804, %v1798, %v1768
  %v1808 = vsel %vm1804, %v1799, %v1770
  %v1809 = vsel %vm1804, %v1800, %v1772
  %v1810 = vsel %vm1804, %v1801, %v1774
  %v1811 = vsel %vm1804, %v1802, %v1776
  %v1812 = vsel %vm1804, %v1803, %v1778
  %v1813 = vld [vmem:[%s6] sm:$0xff]
  %v1814 = vld [vmem:[%s6 + $0x8] sm:$0xff]
  %v1815 = vld [vmem:[%s6 + $0x10] sm:$0xff]
  %v1816 = vld [vmem:[%s6 + $0x18] sm:$0xff]
  %v1817 = vld [vmem:[%s6 + $0x20] sm:$0xff]
  %v1818 = vld [vmem:[%s6 + $0x28] sm:$0xff]
  %v1819 = vld [vmem:[%s6 + $0x30] sm:$0xff]
  %v1820 = vld [vmem:[%s6 + $0x38] sm:$0xff]
  %v1821 = vld [vmem:[%s6 + $0x40] sm:$0xff]
  %v1822 = vld [vmem:[%s6 + $0x48] sm:$0xff]
  %v1823 = vld [vmem:[%s6 + $0x50] sm:$0xff]
  %v1824 = vld [vmem:[%s6 + $0x58] sm:$0xff]
  %v1825 = vld [vmem:[%s6 + $0x60] sm:$0xff]
  %v1826 = vld [vmem:[%s6 + $0x68] sm:$0xff]
  %v1827 = vld [vmem:[%s6 + $0x70] sm:$0xff]
  %v1828 = vld [vmem:[%s6 + $0x78] sm:$0xff]
  %v1829 = vld [vmem:[%s7] sm:$0x1]
  %v1830 = vld [vmem:[%s8] sm:$0x1]
  %v1831 = vld [vmem:[%s9] sm:$0x1]
  %1832 = vmatprep.subr.mxu0 0.0
  %1833 = vmatpush1.msra.mxu0 %v1813
  %1834 = vmatprep.subr.mxu0 0.0
  %1835 = vmatpush1.msra.mxu0 %v1814
  %1836 = vmatprep.subr.mxu0 0.0
  %1837 = vmatpush1.msra.mxu0 %v1815
  %1838 = vmatprep.subr.mxu0 0.0
  %1839 = vmatpush1.msra.mxu0 %v1816
  %1840 = vmatprep.subr.mxu0 0.0
  %1841 = vmatpush1.msra.mxu0 %v1817
  %1842 = vmatprep.subr.mxu0 0.0
  %1843 = vmatpush1.msra.mxu0 %v1818
  %1844 = vmatprep.subr.mxu0 0.0
  %1845 = vmatpush1.msra.mxu0 %v1819
  %1846 = vmatprep.subr.mxu0 0.0
  %1847 = vmatpush1.msra.mxu0 %v1820
  %1848 = vmatprep.subr.mxu0 0.0
  %1849 = vmatpush1.msra.mxu0 %v1821
  %1850 = vmatprep.subr.mxu0 0.0
  %1851 = vmatpush1.msra.mxu0 %v1822
  %1852 = vmatprep.subr.mxu0 0.0
  %1853 = vmatpush1.msra.mxu0 %v1823
  %1854 = vmatprep.subr.mxu0 0.0
  %1855 = vmatpush1.msra.mxu0 %v1824
  %1856 = vmatprep.subr.mxu0 0.0
  %1857 = vmatpush1.msra.mxu0 %v1825
  %1858 = vmatprep.subr.mxu0 0.0
  %1859 = vmatpush1.msra.mxu0 %v1826
  %1860 = vmatprep.subr.mxu0 0.0
  %1861 = vmatpush1.msra.mxu0 %v1827
  %1862 = vmatprep.subr.mxu0 0.0
  %1863 = vmatpush1.msra.mxu0 %v1828
  %1864 = vmatprep.subr.mxu0 0.0
  %1865 = vmatpush1.msra.mxu0 0.0
  %1866 = vmatprep.subr.mxu0 0.0
  %1867 = vmatpush1.msra.mxu0 0.0
  %1868 = vmatprep.subr.mxu0 0.0
  %1869 = vmatpush1.msra.mxu0 0.0
  %1870 = vmatprep.subr.mxu0 0.0
  %1871 = vmatpush1.msra.mxu0 0.0
  %1872 = vmatprep.subr.mxu0 0.0
  %1873 = vmatpush1.msra.mxu0 0.0
  %1874 = vmatprep.subr.mxu0 0.0
  %1875 = vmatpush1.msra.mxu0 0.0
  %1876 = vmatprep.subr.mxu0 0.0
  %1877 = vmatpush1.msra.mxu0 0.0
  %1878 = vmatprep.subr.mxu0 0.0
  %1879 = vmatpush1.msra.mxu0 0.0
  %1880 = vmatprep.subr.mxu0 0.0
  %1881 = vmatpush1.msra.mxu0 0.0
  %1882 = vmatprep.subr.mxu0 0.0
  %1883 = vmatpush1.msra.mxu0 0.0
  %1884 = vmatprep.subr.mxu0 0.0
  %1885 = vmatpush1.msra.mxu0 0.0
  %1886 = vmatprep.subr.mxu0 0.0
  %1887 = vmatpush1.msra.mxu0 0.0
  %1888 = vmatprep.subr.mxu0 0.0
  %1889 = vmatpush1.msra.mxu0 0.0
  %1890 = vmatprep.subr.mxu0 0.0
  %1891 = vmatpush1.msra.mxu0 0.0
  %1892 = vmatprep.subr.mxu0 0.0
  %1893 = vmatpush1.msra.mxu0 0.0
  %1894 = vmatprep.subr.mxu0 0.0
  %1895 = vmatpush1.msra.mxu0 0.0
  %1896 = vmatprep.mubr.f32.mxu0 0.0
  %1897 = vmatmul.mubr.f32.gmra.mrb[0].mxu0 %v1805
  %v1898 = vpop.f32.mrb[0].mxu0
  %v1899 = vadd.f32 0.0, %v1898
  %v1900 = vpop.f32.mrb[0].mxu0
  %1901 = vmatprep.mubr.f32.mxu0 0.0
  %1902 = vmatmul.mubr.f32.gmra.mrb[0].mxu0 %v1806
  %v1903 = vpop.f32.mrb[0].mxu0
  %v1904 = vadd.f32 0.0, %v1903
  %v1905 = vpop.f32.mrb[0].mxu0
  %1906 = vmatprep.mubr.f32.mxu0 0.0
  %1907 = vmatmul.mubr.f32.gmra.mrb[0].mxu0 %v1807
  %v1908 = vpop.f32.mrb[0].mxu0
  %v1909 = vadd.f32 0.0, %v1908
  %v1910 = vpop.f32.mrb[0].mxu0
  %1911 = vmatprep.mubr.f32.mxu0 0.0
  %1912 = vmatmul.mubr.f32.gmra.mrb[0].mxu0 %v1808
  %v1913 = vpop.f32.mrb[0].mxu0
  %v1914 = vadd.f32 0.0, %v1913
  %v1915 = vpop.f32.mrb[0].mxu0
  %1916 = vmatprep.mubr.f32.mxu0 0.0
  %1917 = vmatmul.mubr.f32.gmra.mrb[0].mxu0 %v1809
  %v1918 = vpop.f32.mrb[0].mxu0
  %v1919 = vadd.f32 0.0, %v1918
  %v1920 = vpop.f32.mrb[0].mxu0
  %1921 = vmatprep.mubr.f32.mxu0 0.0
  %1922 = vmatmul.mubr.f32.gmra.mrb[0].mxu0 %v1810
  %v1923 = vpop.f32.mrb[0].mxu0
  %v1924 = vadd.f32 0.0, %v1923
  %v1925 = vpop.f32.mrb[0].mxu0
  %1926 = vmatprep.mubr.f32.mxu0 0.0
  %1927 = vmatmul.mubr.f32.gmra.mrb[0].mxu0 %v1811
  %v1928 = vpop.f32.mrb[0].mxu0
  %v1929 = vadd.f32 0.0, %v1928
  %v1930 = vpop.f32.mrb[0].mxu0
  %1931 = vmatprep.mubr.f32.mxu0 0.0
  %1932 = vmatmul.mubr.f32.gmra.mrb[0].mxu0 %v1812
  %v1933 = vpop.f32.mrb[0].mxu0
  %v1934 = vadd.f32 0.0, %v1933
  %v1935 = vpop.f32.mrb[0].mxu0
  %1936 = vdwg.mxu0
  %v1938 = vsel %vm1787, %v1829, 0
  %v1941 = vsel %vm1787, %v1899, 0
  %v1944 = vsel %vm1787, %v1904, 0
  %v1947 = vsel %vm1787, %v1909, 0
  %v1950 = vsel %vm1787, %v1914, 0
  %v1953 = vsel %vm1787, %v1919, 0
  %v1956 = vsel %vm1787, %v1924, 0
  %v1959 = vsel %vm1787, %v1929, 0
  %v1962 = vsel %vm1787, %v1934, 0
  %1964 = vmatprep.subr.mxu0 0.0
  %1965 = vmatpush1.xpose.msra.mxu0 %v1941
  %1966 = vmatprep.subr.mxu0 0.0
  %1967 = vmatpush1.xpose.msra.mxu0 %v1944
  %1968 = vmatprep.subr.mxu0 0.0
  %1969 = vmatpush1.xpose.msra.mxu0 %v1947
  %1970 = vmatprep.subr.mxu0 0.0
  %1971 = vmatpush1.xpose.msra.mxu0 %v1950
  %1972 = vmatprep.subr.mxu0 0.0
  %1973 = vmatpush1.xpose.msra.mxu0 %v1953
  %1974 = vmatprep.subr.mxu0 0.0
  %1975 = vmatpush1.xpose.msra.mxu0 %v1956
  %1976 = vmatprep.subr.mxu0 0.0
  %1977 = vmatpush1.xpose.msra.mxu0 %v1959
  %1978 = vmatprep.subr.mxu0 0.0
  %1979 = vmatpush1.xpose.msra.mxu0 %v1962
  %1980 = vmatprep.subr.mxu0 0.0
  %1981 = vmatpush1.xpose.msra.mxu0 0.0
  %1982 = vmatprep.subr.mxu0 0.0
  %1983 = vmatpush1.xpose.msra.mxu0 0.0
  %1984 = vmatprep.subr.mxu0 0.0
  %1985 = vmatpush1.xpose.msra.mxu0 0.0
  %1986 = vmatprep.subr.mxu0 0.0
  %1987 = vmatpush1.xpose.msra.mxu0 0.0
  %1988 = vmatprep.subr.mxu0 0.0
  %1989 = vmatpush1.xpose.msra.mxu0 0.0
  %1990 = vmatprep.subr.mxu0 0.0
  %1991 = vmatpush1.xpose.msra.mxu0 0.0
  %1992 = vmatprep.subr.mxu0 0.0
  %1993 = vmatpush1.xpose.msra.mxu0 0.0
  %1994 = vmatprep.subr.mxu0 0.0
  %1995 = vmatpush1.xpose.msra.mxu0 0.0
  %1996 = vmatprep.subr.mxu0 0.0
  %1997 = vmatpush1.xpose.msra.mxu0 0.0
  %1998 = vmatprep.subr.mxu0 0.0
  %1999 = vmatpush1.xpose.msra.mxu0 0.0
  %2000 = vmatprep.subr.mxu0 0.0
  %2001 = vmatpush1.xpose.msra.mxu0 0.0
  %2002 = vmatprep.subr.mxu0 0.0
  %2003 = vmatpush1.xpose.msra.mxu0 0.0
  %2004 = vmatprep.subr.mxu0 0.0
  %2005 = vmatpush1.xpose.msra.mxu0 0.0
  %2006 = vmatprep.subr.mxu0 0.0
  %2007 = vmatpush1.xpose.msra.mxu0 0.0
  %2008 = vmatprep.subr.mxu0 0.0
  %2009 = vmatpush1.xpose.msra.mxu0 0.0
  %2010 = vmatprep.subr.mxu0 0.0
  %2011 = vmatpush1.xpose.msra.mxu0 0.0
  %2012 = vmatprep.subr.mxu0 0.0
  %2013 = vmatpush1.xpose.msra.mxu0 0.0
  %2014 = vmatprep.subr.mxu0 0.0
  %2015 = vmatpush1.xpose.msra.mxu0 0.0
  %2016 = vmatprep.subr.mxu0 0.0
  %2017 = vmatpush1.xpose.msra.mxu0 0.0
  %2018 = vmatprep.subr.mxu0 0.0
  %2019 = vmatpush1.xpose.msra.mxu0 0.0
  %2020 = vmatprep.subr.mxu0 0.0
  %2021 = vmatpush1.xpose.msra.mxu0 0.0
  %2022 = vmatprep.subr.mxu0 0.0
  %2023 = vmatpush1.xpose.msra.mxu0 0.0
  %2024 = vmatprep.subr.mxu0 0.0
  %2025 = vmatpush1.xpose.msra.mxu0 0.0
  %2026 = vmatprep.subr.mxu0 0.0
  %2027 = vmatpush1.xpose.msra.mxu0 0.0
  %2028 = vmatprep.mubr.f32.mxu0 0.0
  %2029 = vmatmul.mubr.f32.gmra.mrb[0].mxu0 %v1938
  %v2030 = vpop.f32.mrb[0].mxu0
  %v2031 = vadd.f32 0.0, %v2030
  %v2032 = vpop.f32.mrb[0].mxu0
  %2033 = vdwg.mxu0
  %v2035 = vlaneseq
  %v2036 = vshrl.u32 %v2035, 7
  %v2037 = vsub.s32 0, %v2036
  %v2038 = vrot.slane %v1830, %v2037
  %v2040 = vmul.f32 %v1899, %v2038
  %v2041 = vmul.f32 %v1904, %v2038
  %v2042 = vmul.f32 %v1909, %v2038
  %v2043 = vmul.f32 %v1914, %v2038
  %v2044 = vmul.f32 %v1919, %v2038
  %v2045 = vmul.f32 %v1924, %v2038
  %v2046 = vmul.f32 %v1929, %v2038
  %v2047 = vmul.f32 %v1934, %v2038
  %v2048 = vsel %vm1787, %v2040, 0.0
  %2049 = vadd.xlane.f32.xlu0 %v2048
  %v2050 = vpop.xlane.xlu0 %2049
  %v2051 = vsel %vm1787, %v2041, 0.0
  %2052 = vadd.xlane.f32.xlu0 %v2051
  %v2053 = vpop.xlane.xlu0 %2052
  %v2054 = vsel %vm1787, %v2042, 0.0
  %2055 = vadd.xlane.f32.xlu0 %v2054
  %v2056 = vpop.xlane.xlu0 %2055
  %v2057 = vsel %vm1787, %v2043, 0.0
  %2058 = vadd.xlane.f32.xlu0 %v2057
  %v2059 = vpop.xlane.xlu0 %2058
  %v2060 = vsel %vm1787, %v2044, 0.0
  %2061 = vadd.xlane.f32.xlu0 %v2060
  %v2062 = vpop.xlane.xlu0 %2061
  %v2063 = vsel %vm1787, %v2045, 0.0
  %2064 = vadd.xlane.f32.xlu0 %v2063
  %v2065 = vpop.xlane.xlu0 %2064
  %v2066 = vsel %vm1787, %v2046, 0.0
  %2067 = vadd.xlane.f32.xlu0 %v2066
  %v2068 = vpop.xlane.xlu0 %2067
  %v2069 = vsel %vm1787, %v2047, 0.0
  %2070 = vadd.xlane.f32.xlu0 %v2069
  %v2071 = vpop.xlane.xlu0 %2070
  %v2072 = vlaneseq
  %v2073 = vshrl.u32 %v2072, 7
  %v2074 = vsub.s32 0, %v2073
  %v2075 = vrot.slane %v2031, %v2074
  %v2076 = vadd.f32 %v2050, %v2075
  %v2077 = vadd.f32 %v2053, %v2075
  %v2078 = vadd.f32 %v2056, %v2075
  %v2079 = vadd.f32 %v2059, %v2075
  %v2080 = vadd.f32 %v2062, %v2075
  %v2081 = vadd.f32 %v2065, %v2075
  %v2082 = vadd.f32 %v2068, %v2075
  %v2083 = vadd.f32 %v2071, %v2075
  %v2084 = vmul.f32 %v2076, 0.2
  %v2085 = vmul.f32 %v2077, 0.2
  %v2086 = vmul.f32 %v2078, 0.2
  %v2087 = vmul.f32 %v2079, 0.2
  %v2088 = vmul.f32 %v2080, 0.2
  %v2089 = vmul.f32 %v2081, 0.2
  %v2090 = vmul.f32 %v2082, 0.2
  %v2091 = vmul.f32 %v2083, 0.2
  %v2092 = vmax.f32 %v2076, %v2084
  %v2093 = vmax.f32 %v2077, %v2085
  %v2094 = vmax.f32 %v2078, %v2086
  %v2095 = vmax.f32 %v2079, %v2087
  %v2096 = vmax.f32 %v2080, %v2088
  %v2097 = vmax.f32 %v2081, %v2089
  %v2098 = vmax.f32 %v2082, %v2090
  %v2099 = vmax.f32 %v2083, %v2091
  %v2100 = vadd.f32 %v2092, %v65
  %v2101 = vadd.f32 %v2093, %v66
  %v2102 = vadd.f32 %v2094, %v67
  %v2103 = vadd.f32 %v2095, %v68
  %v2104 = vadd.f32 %v2096, %v69
  %v2105 = vadd.f32 %v2097, %v70
  %v2106 = vadd.f32 %v2098, %v71
  %v2107 = vadd.f32 %v2099, %v72
  %v2108 = vsel %vm459, %v2100, -inf
  %2109 = vmax.xlane.f32.xlu0 %v2108
  %v2110 = vpop.xlane.xlu0 %2109
  %v2111 = vsel %vm459, %v2101, -inf
  %2112 = vmax.xlane.f32.xlu0 %v2111
  %v2113 = vpop.xlane.xlu0 %2112
  %v2114 = vsel %vm459, %v2102, -inf
  %2115 = vmax.xlane.f32.xlu0 %v2114
  %v2116 = vpop.xlane.xlu0 %2115
  %v2117 = vsel %vm459, %v2103, -inf
  %2118 = vmax.xlane.f32.xlu0 %v2117
  %v2119 = vpop.xlane.xlu0 %2118
  %v2120 = vsel %vm459, %v2104, -inf
  %2121 = vmax.xlane.f32.xlu0 %v2120
  %v2122 = vpop.xlane.xlu0 %2121
  %v2123 = vsel %vm459, %v2105, -inf
  %2124 = vmax.xlane.f32.xlu0 %v2123
  %v2125 = vpop.xlane.xlu0 %2124
  %v2126 = vsel %vm459, %v2106, -inf
  %2127 = vmax.xlane.f32.xlu0 %v2126
  %v2128 = vpop.xlane.xlu0 %2127
  %v2129 = vsel %vm459, %v2107, -inf
  %2130 = vmax.xlane.f32.xlu0 %v2129
  %v2131 = vpop.xlane.xlu0 %2130
  %v2132 = vsub.f32 %v2100, %v2110
  %v2133 = vsub.f32 %v2101, %v2113
  %v2134 = vsub.f32 %v2102, %v2116
  %v2135 = vsub.f32 %v2103, %v2119
  %v2136 = vsub.f32 %v2104, %v2122
  %v2137 = vsub.f32 %v2105, %v2125
  %v2138 = vsub.f32 %v2106, %v2128
  %v2139 = vsub.f32 %v2107, %v2131
  %v2140 = vmul.f32 %v2132, 1.442695
  %v2141 = vpow.pop %v2140
  %v2142 = vmul.f32 %v2133, 1.442695
  %v2143 = vpow.pop %v2142
  %v2144 = vmul.f32 %v2134, 1.442695
  %v2145 = vpow.pop %v2144
  %v2146 = vmul.f32 %v2135, 1.442695
  %v2147 = vpow.pop %v2146
  %v2148 = vmul.f32 %v2136, 1.442695
  %v2149 = vpow.pop %v2148
  %v2150 = vmul.f32 %v2137, 1.442695
  %v2151 = vpow.pop %v2150
  %v2152 = vmul.f32 %v2138, 1.442695
  %v2153 = vpow.pop %v2152
  %v2154 = vmul.f32 %v2139, 1.442695
  %v2155 = vpow.pop %v2154
  %v2156 = vsel %vm459, %v2141, 0.0
  %2157 = vadd.xlane.f32.xlu0 %v2156
  %v2158 = vpop.xlane.xlu0 %2157
  %v2159 = vsel %vm459, %v2143, 0.0
  %2160 = vadd.xlane.f32.xlu0 %v2159
  %v2161 = vpop.xlane.xlu0 %2160
  %v2162 = vsel %vm459, %v2145, 0.0
  %2163 = vadd.xlane.f32.xlu0 %v2162
  %v2164 = vpop.xlane.xlu0 %2163
  %v2165 = vsel %vm459, %v2147, 0.0
  %2166 = vadd.xlane.f32.xlu0 %v2165
  %v2167 = vpop.xlane.xlu0 %2166
  %v2168 = vsel %vm459, %v2149, 0.0
  %2169 = vadd.xlane.f32.xlu0 %v2168
  %v2170 = vpop.xlane.xlu0 %2169
  %v2171 = vsel %vm459, %v2151, 0.0
  %2172 = vadd.xlane.f32.xlu0 %v2171
  %v2173 = vpop.xlane.xlu0 %2172
  %v2174 = vsel %vm459, %v2153, 0.0
  %2175 = vadd.xlane.f32.xlu0 %v2174
  %v2176 = vpop.xlane.xlu0 %2175
  %v2177 = vsel %vm459, %v2155, 0.0
  %2178 = vadd.xlane.f32.xlu0 %v2177
  %v2179 = vpop.xlane.xlu0 %2178
  %v2181 = vsel %vm459, %v2141, 0
  %v2184 = vsel %vm459, %v2143, 0
  %v2187 = vsel %vm459, %v2145, 0
  %v2190 = vsel %vm459, %v2147, 0
  %v2193 = vsel %vm459, %v2149, 0
  %v2196 = vsel %vm459, %v2151, 0
  %v2199 = vsel %vm459, %v2153, 0
  %v2202 = vsel %vm459, %v2155, 0
  %2204 = vmatprep.subr.mxu0 0.0
  %2205 = vmatpush1.msra.mxu0 %v1899
  %2206 = vmatprep.subr.mxu0 0.0
  %2207 = vmatpush1.msra.mxu0 %v1904
  %2208 = vmatprep.subr.mxu0 0.0
  %2209 = vmatpush1.msra.mxu0 %v1909
  %2210 = vmatprep.subr.mxu0 0.0
  %2211 = vmatpush1.msra.mxu0 %v1914
  %2212 = vmatprep.subr.mxu0 0.0
  %2213 = vmatpush1.msra.mxu0 %v1919
  %2214 = vmatprep.subr.mxu0 0.0
  %2215 = vmatpush1.msra.mxu0 %v1924
  %2216 = vmatprep.subr.mxu0 0.0
  %2217 = vmatpush1.msra.mxu0 %v1929
  %2218 = vmatprep.subr.mxu0 0.0
  %2219 = vmatpush1.msra.mxu0 %v1934
  %2220 = vmatprep.subr.mxu0 0.0
  %2221 = vmatpush1.msra.mxu0 0.0
  %2222 = vmatprep.subr.mxu0 0.0
  %2223 = vmatpush1.msra.mxu0 0.0
  %2224 = vmatprep.subr.mxu0 0.0
  %2225 = vmatpush1.msra.mxu0 0.0
  %2226 = vmatprep.subr.mxu0 0.0
  %2227 = vmatpush1.msra.mxu0 0.0
  %2228 = vmatprep.subr.mxu0 0.0
  %2229 = vmatpush1.msra.mxu0 0.0
  %2230 = vmatprep.subr.mxu0 0.0
  %2231 = vmatpush1.msra.mxu0 0.0
  %2232 = vmatprep.subr.mxu0 0.0
  %2233 = vmatpush1.msra.mxu0 0.0
  %2234 = vmatprep.subr.mxu0 0.0
  %2235 = vmatpush1.msra.mxu0 0.0
  %2236 = vmatprep.subr.mxu0 0.0
  %2237 = vmatpush1.msra.mxu0 0.0
  %2238 = vmatprep.subr.mxu0 0.0
  %2239 = vmatpush1.msra.mxu0 0.0
  %2240 = vmatprep.subr.mxu0 0.0
  %2241 = vmatpush1.msra.mxu0 0.0
  %2242 = vmatprep.subr.mxu0 0.0
  %2243 = vmatpush1.msra.mxu0 0.0
  %2244 = vmatprep.subr.mxu0 0.0
  %2245 = vmatpush1.msra.mxu0 0.0
  %2246 = vmatprep.subr.mxu0 0.0
  %2247 = vmatpush1.msra.mxu0 0.0
  %2248 = vmatprep.subr.mxu0 0.0
  %2249 = vmatpush1.msra.mxu0 0.0
  %2250 = vmatprep.subr.mxu0 0.0
  %2251 = vmatpush1.msra.mxu0 0.0
  %2252 = vmatprep.subr.mxu0 0.0
  %2253 = vmatpush1.msra.mxu0 0.0
  %2254 = vmatprep.subr.mxu0 0.0
  %2255 = vmatpush1.msra.mxu0 0.0
  %2256 = vmatprep.subr.mxu0 0.0
  %2257 = vmatpush1.msra.mxu0 0.0
  %2258 = vmatprep.subr.mxu0 0.0
  %2259 = vmatpush1.msra.mxu0 0.0
  %2260 = vmatprep.subr.mxu0 0.0
  %2261 = vmatpush1.msra.mxu0 0.0
  %2262 = vmatprep.subr.mxu0 0.0
  %2263 = vmatpush1.msra.mxu0 0.0
  %2264 = vmatprep.subr.mxu0 0.0
  %2265 = vmatpush1.msra.mxu0 0.0
  %2266 = vmatprep.subr.mxu0 0.0
  %2267 = vmatpush1.msra.mxu0 0.0
  %2268 = vmatprep.mubr.f32.mxu0 0.0
  %2269 = vmatmul.mubr.f32.gmra.mrb[0].mxu0 %v2181
  %v2270 = vpop.f32.mrb[0].mxu0
  %v2271 = vadd.f32 0.0, %v2270
  %v2272 = vpop.f32.mrb[0].mxu0
  %2273 = vmatprep.mubr.f32.mxu0 0.0
  %2274 = vmatmul.mubr.f32.gmra.mrb[0].mxu0 %v2184
  %v2275 = vpop.f32.mrb[0].mxu0
  %v2276 = vadd.f32 0.0, %v2275
  %v2277 = vpop.f32.mrb[0].mxu0
  %2278 = vmatprep.mubr.f32.mxu0 0.0
  %2279 = vmatmul.mubr.f32.gmra.mrb[0].mxu0 %v2187
  %v2280 = vpop.f32.mrb[0].mxu0
  %v2281 = vadd.f32 0.0, %v2280
  %v2282 = vpop.f32.mrb[0].mxu0
  %2283 = vmatprep.mubr.f32.mxu0 0.0
  %2284 = vmatmul.mubr.f32.gmra.mrb[0].mxu0 %v2190
  %v2285 = vpop.f32.mrb[0].mxu0
  %v2286 = vadd.f32 0.0, %v2285
  %v2287 = vpop.f32.mrb[0].mxu0
  %2288 = vmatprep.mubr.f32.mxu0 0.0
  %2289 = vmatmul.mubr.f32.gmra.mrb[0].mxu0 %v2193
  %v2290 = vpop.f32.mrb[0].mxu0
  %v2291 = vadd.f32 0.0, %v2290
  %v2292 = vpop.f32.mrb[0].mxu0
  %2293 = vmatprep.mubr.f32.mxu0 0.0
  %2294 = vmatmul.mubr.f32.gmra.mrb[0].mxu0 %v2196
  %v2295 = vpop.f32.mrb[0].mxu0
  %v2296 = vadd.f32 0.0, %v2295
  %v2297 = vpop.f32.mrb[0].mxu0
  %2298 = vmatprep.mubr.f32.mxu0 0.0
  %2299 = vmatmul.mubr.f32.gmra.mrb[0].mxu0 %v2199
  %v2300 = vpop.f32.mrb[0].mxu0
  %v2301 = vadd.f32 0.0, %v2300
  %v2302 = vpop.f32.mrb[0].mxu0
  %2303 = vmatprep.mubr.f32.mxu0 0.0
  %2304 = vmatmul.mubr.f32.gmra.mrb[0].mxu0 %v2202
  %v2305 = vpop.f32.mrb[0].mxu0
  %v2306 = vadd.f32 0.0, %v2305
  %v2307 = vpop.f32.mrb[0].mxu0
  %2308 = vdwg.mxu0
  %v2309 = vrcp.pop %v2158
  %v2310 = vrcp.pop %v2161
  %v2311 = vrcp.pop %v2164
  %v2312 = vrcp.pop %v2167
  %v2313 = vrcp.pop %v2170
  %v2314 = vrcp.pop %v2173
  %v2315 = vrcp.pop %v2176
  %v2316 = vrcp.pop %v2179
  %v2317 = vmul.f32 %v2271, %v2309
  %v2318 = vmul.f32 %v2276, %v2310
  %v2319 = vmul.f32 %v2281, %v2311
  %v2320 = vmul.f32 %v2286, %v2312
  %v2321 = vmul.f32 %v2291, %v2313
  %v2322 = vmul.f32 %v2296, %v2314
  %v2323 = vmul.f32 %v2301, %v2315
  %v2324 = vmul.f32 %v2306, %v2316
  %v2326 = vlaneseq
  %v2327 = vshrl.u32 %v2326, 7
  %v2328 = vsub.s32 0, %v2327
  %v2329 = vrot.slane %v1831, %v2328
  %v2331 = vadd.f32 %v2317, %v2329
  %v2332 = vadd.f32 %v2318, %v2329
  %v2333 = vadd.f32 %v2319, %v2329
  %v2334 = vadd.f32 %v2320, %v2329
  %v2335 = vadd.f32 %v2321, %v2329
  %v2336 = vadd.f32 %v2322, %v2329
  %v2337 = vadd.f32 %v2323, %v2329
  %v2338 = vadd.f32 %v2324, %v2329
  %v2339 = vmax.f32 %v2331, 0.0
  %v2340 = vmax.f32 %v2332, 0.0
  %v2341 = vmax.f32 %v2333, 0.0
  %v2342 = vmax.f32 %v2334, 0.0
  %v2343 = vmax.f32 %v2335, 0.0
  %v2344 = vmax.f32 %v2336, 0.0
  %v2345 = vmax.f32 %v2337, 0.0
  %v2346 = vmax.f32 %v2338, 0.0
  %v2347 = vld [vmem:[%s10] sm:$0xff]
  %v2348 = vld [vmem:[%s10 + $0x8] sm:$0xff]
  %v2349 = vld [vmem:[%s10 + $0x10] sm:$0xff]
  %v2350 = vld [vmem:[%s10 + $0x18] sm:$0xff]
  %v2351 = vld [vmem:[%s11] sm:$0x1]
  %v2353 = vlaneseq
  %v2354 = vshrl.u32 %v2353, 7
  %v2355 = vsub.s32 0, %v2354
  %v2356 = vrot.slane %v2351, %v2355
  %v2359 = vsel %vm1787, %v2339, 0
  %v2362 = vsel %vm1787, %v2340, 0
  %v2365 = vsel %vm1787, %v2341, 0
  %v2368 = vsel %vm1787, %v2342, 0
  %v2371 = vsel %vm1787, %v2343, 0
  %v2374 = vsel %vm1787, %v2344, 0
  %v2377 = vsel %vm1787, %v2345, 0
  %v2380 = vsel %vm1787, %v2346, 0
  %2382 = vmatprep.subr.mxu0 0.0
  %2383 = vmatpush1.msra.mxu0 %v2347
  %2384 = vmatprep.subr.mxu0 0.0
  %2385 = vmatpush1.msra.mxu0 %v2348
  %2386 = vmatprep.subr.mxu0 0.0
  %2387 = vmatpush1.msra.mxu0 %v2349
  %2388 = vmatprep.subr.mxu0 0.0
  %2389 = vmatpush1.msra.mxu0 %v2350
  %2390 = vmatprep.subr.mxu0 0.0
  %2391 = vmatpush1.msra.mxu0 0.0
  %2392 = vmatprep.subr.mxu0 0.0
  %2393 = vmatpush1.msra.mxu0 0.0
  %2394 = vmatprep.subr.mxu0 0.0
  %2395 = vmatpush1.msra.mxu0 0.0
  %2396 = vmatprep.subr.mxu0 0.0
  %2397 = vmatpush1.msra.mxu0 0.0
  %2398 = vmatprep.subr.mxu0 0.0
  %2399 = vmatpush1.msra.mxu0 0.0
  %2400 = vmatprep.subr.mxu0 0.0
  %2401 = vmatpush1.msra.mxu0 0.0
  %2402 = vmatprep.subr.mxu0 0.0
  %2403 = vmatpush1.msra.mxu0 0.0
  %2404 = vmatprep.subr.mxu0 0.0
  %2405 = vmatpush1.msra.mxu0 0.0
  %2406 = vmatprep.subr.mxu0 0.0
  %2407 = vmatpush1.msra.mxu0 0.0
  %2408 = vmatprep.subr.mxu0 0.0
  %2409 = vmatpush1.msra.mxu0 0.0
  %2410 = vmatprep.subr.mxu0 0.0
  %2411 = vmatpush1.msra.mxu0 0.0
  %2412 = vmatprep.subr.mxu0 0.0
  %2413 = vmatpush1.msra.mxu0 0.0
  %2414 = vmatprep.subr.mxu0 0.0
  %2415 = vmatpush1.msra.mxu0 0.0
  %2416 = vmatprep.subr.mxu0 0.0
  %2417 = vmatpush1.msra.mxu0 0.0
  %2418 = vmatprep.subr.mxu0 0.0
  %2419 = vmatpush1.msra.mxu0 0.0
  %2420 = vmatprep.subr.mxu0 0.0
  %2421 = vmatpush1.msra.mxu0 0.0
  %2422 = vmatprep.subr.mxu0 0.0
  %2423 = vmatpush1.msra.mxu0 0.0
  %2424 = vmatprep.subr.mxu0 0.0
  %2425 = vmatpush1.msra.mxu0 0.0
  %2426 = vmatprep.subr.mxu0 0.0
  %2427 = vmatpush1.msra.mxu0 0.0
  %2428 = vmatprep.subr.mxu0 0.0
  %2429 = vmatpush1.msra.mxu0 0.0
  %2430 = vmatprep.subr.mxu0 0.0
  %2431 = vmatpush1.msra.mxu0 0.0
  %2432 = vmatprep.subr.mxu0 0.0
  %2433 = vmatpush1.msra.mxu0 0.0
  %2434 = vmatprep.subr.mxu0 0.0
  %2435 = vmatpush1.msra.mxu0 0.0
  %2436 = vmatprep.subr.mxu0 0.0
  %2437 = vmatpush1.msra.mxu0 0.0
  %2438 = vmatprep.subr.mxu0 0.0
  %2439 = vmatpush1.msra.mxu0 0.0
  %2440 = vmatprep.subr.mxu0 0.0
  %2441 = vmatpush1.msra.mxu0 0.0
  %2442 = vmatprep.subr.mxu0 0.0
  %2443 = vmatpush1.msra.mxu0 0.0
  %2444 = vmatprep.subr.mxu0 0.0
  %2445 = vmatpush1.msra.mxu0 0.0
  %2446 = vmatprep.mubr.f32.mxu0 0.0
  %2447 = vmatmul.mubr.f32.gmra.mrb[0].mxu0 %v2359
  %v2448 = vpop.f32.mrb[0].mxu0
  %v2449 = vadd.f32 %v2356, %v2448
  %v2450 = vpop.f32.mrb[0].mxu0
  %2451 = vmatprep.mubr.f32.mxu0 0.0
  %2452 = vmatmul.mubr.f32.gmra.mrb[0].mxu0 %v2362
  %v2453 = vpop.f32.mrb[0].mxu0
  %v2454 = vadd.f32 %v2356, %v2453
  %v2455 = vpop.f32.mrb[0].mxu0
  %2456 = vmatprep.mubr.f32.mxu0 0.0
  %2457 = vmatmul.mubr.f32.gmra.mrb[0].mxu0 %v2365
  %v2458 = vpop.f32.mrb[0].mxu0
  %v2459 = vadd.f32 %v2356, %v2458
  %v2460 = vpop.f32.mrb[0].mxu0
  %2461 = vmatprep.mubr.f32.mxu0 0.0
  %2462 = vmatmul.mubr.f32.gmra.mrb[0].mxu0 %v2368
  %v2463 = vpop.f32.mrb[0].mxu0
  %v2464 = vadd.f32 %v2356, %v2463
  %v2465 = vpop.f32.mrb[0].mxu0
  %2466 = vmatprep.mubr.f32.mxu0 0.0
  %2467 = vmatmul.mubr.f32.gmra.mrb[0].mxu0 %v2371
  %v2468 = vpop.f32.mrb[0].mxu0
  %v2469 = vadd.f32 %v2356, %v2468
  %v2470 = vpop.f32.mrb[0].mxu0
  %2471 = vmatprep.mubr.f32.mxu0 0.0
  %2472 = vmatmul.mubr.f32.gmra.mrb[0].mxu0 %v2374
  %v2473 = vpop.f32.mrb[0].mxu0
  %v2474 = vadd.f32 %v2356, %v2473
  %v2475 = vpop.f32.mrb[0].mxu0
  %2476 = vmatprep.mubr.f32.mxu0 0.0
  %2477 = vmatmul.mubr.f32.gmra.mrb[0].mxu0 %v2377
  %v2478 = vpop.f32.mrb[0].mxu0
  %v2479 = vadd.f32 %v2356, %v2478
  %v2480 = vpop.f32.mrb[0].mxu0
  %2481 = vmatprep.mubr.f32.mxu0 0.0
  %2482 = vmatmul.mubr.f32.gmra.mrb[0].mxu0 %v2380
  %v2483 = vpop.f32.mrb[0].mxu0
  %v2484 = vadd.f32 %v2356, %v2483
  %v2485 = vpop.f32.mrb[0].mxu0
  %2486 = vdwg.mxu0
  %2487 = vmax.xlane.f32.xlu0 %v2449
  %v2488 = vpop.xlane.xlu0 %2487
  %2489 = vmax.xlane.f32.xlu0 %v2454
  %v2490 = vpop.xlane.xlu0 %2489
  %2491 = vmax.xlane.f32.xlu0 %v2459
  %v2492 = vpop.xlane.xlu0 %2491
  %2493 = vmax.xlane.f32.xlu0 %v2464
  %v2494 = vpop.xlane.xlu0 %2493
  %2495 = vmax.xlane.f32.xlu0 %v2469
  %v2496 = vpop.xlane.xlu0 %2495
  %2497 = vmax.xlane.f32.xlu0 %v2474
  %v2498 = vpop.xlane.xlu0 %2497
  %2499 = vmax.xlane.f32.xlu0 %v2479
  %v2500 = vpop.xlane.xlu0 %2499
  %2501 = vmax.xlane.f32.xlu0 %v2484
  %v2502 = vpop.xlane.xlu0 %2501
  %v2503 = vsub.f32 %v2449, %v2488
  %v2504 = vsub.f32 %v2454, %v2490
  %v2505 = vsub.f32 %v2459, %v2492
  %v2506 = vsub.f32 %v2464, %v2494
  %v2507 = vsub.f32 %v2469, %v2496
  %v2508 = vsub.f32 %v2474, %v2498
  %v2509 = vsub.f32 %v2479, %v2500
  %v2510 = vsub.f32 %v2484, %v2502
  %v2511 = vmul.f32 %v2503, 1.442695
  %v2512 = vpow.pop %v2511
  %v2513 = vmul.f32 %v2504, 1.442695
  %v2514 = vpow.pop %v2513
  %v2515 = vmul.f32 %v2505, 1.442695
  %v2516 = vpow.pop %v2515
  %v2517 = vmul.f32 %v2506, 1.442695
  %v2518 = vpow.pop %v2517
  %v2519 = vmul.f32 %v2507, 1.442695
  %v2520 = vpow.pop %v2519
  %v2521 = vmul.f32 %v2508, 1.442695
  %v2522 = vpow.pop %v2521
  %v2523 = vmul.f32 %v2509, 1.442695
  %v2524 = vpow.pop %v2523
  %v2525 = vmul.f32 %v2510, 1.442695
  %v2526 = vpow.pop %v2525
  %2527 = vadd.xlane.f32.xlu0 %v2512
  %v2528 = vpop.xlane.xlu0 %2527
  %2529 = vadd.xlane.f32.xlu0 %v2514
  %v2530 = vpop.xlane.xlu0 %2529
  %2531 = vadd.xlane.f32.xlu0 %v2516
  %v2532 = vpop.xlane.xlu0 %2531
  %2533 = vadd.xlane.f32.xlu0 %v2518
  %v2534 = vpop.xlane.xlu0 %2533
  %2535 = vadd.xlane.f32.xlu0 %v2520
  %v2536 = vpop.xlane.xlu0 %2535
  %2537 = vadd.xlane.f32.xlu0 %v2522
  %v2538 = vpop.xlane.xlu0 %2537
  %2539 = vadd.xlane.f32.xlu0 %v2524
  %v2540 = vpop.xlane.xlu0 %2539
  %2541 = vadd.xlane.f32.xlu0 %v2526
  %v2542 = vpop.xlane.xlu0 %2541
  %v2543 = vlog2.pop %v2528
  %v2544 = vmul.f32 %v2543, 0.6931472
  %v2545 = vlog2.pop %v2530
  %v2546 = vmul.f32 %v2545, 0.6931472
  %v2547 = vlog2.pop %v2532
  %v2548 = vmul.f32 %v2547, 0.6931472
  %v2549 = vlog2.pop %v2534
  %v2550 = vmul.f32 %v2549, 0.6931472
  %v2551 = vlog2.pop %v2536
  %v2552 = vmul.f32 %v2551, 0.6931472
  %v2553 = vlog2.pop %v2538
  %v2554 = vmul.f32 %v2553, 0.6931472
  %v2555 = vlog2.pop %v2540
  %v2556 = vmul.f32 %v2555, 0.6931472
  %v2557 = vlog2.pop %v2542
  %v2558 = vmul.f32 %v2557, 0.6931472
  %v2559 = vsub.f32 %v2503, %v2544
  %v2560 = vsub.f32 %v2504, %v2546
  %v2561 = vsub.f32 %v2505, %v2548
  %v2562 = vsub.f32 %v2506, %v2550
  %v2563 = vsub.f32 %v2507, %v2552
  %v2564 = vsub.f32 %v2508, %v2554
  %v2565 = vsub.f32 %v2509, %v2556
  %v2566 = vsub.f32 %v2510, %v2558
  %2567 = vst [vmem:[%s12] sm:$0xff] %v2559
  %2568 = vst [vmem:[%s12 + $0x8] sm:$0xff] %v2560
  %2569 = vst [vmem:[%s12 + $0x10] sm:$0xff] %v2561
  %2570 = vst [vmem:[%s12 + $0x18] sm:$0xff] %v2562
  %2571 = vst [vmem:[%s12 + $0x20] sm:$0xff] %v2563
  %2572 = vst [vmem:[%s12 + $0x28] sm:$0xff] %v2564
  %2573 = vst [vmem:[%s12 + $0x30] sm:$0xff] %v2565
  %2574 = vst [vmem:[%s12 + $0x38] sm:$0xff] %v2566
  // Predicated region
  $region50: #{gat_net_forward.1} parent=0 // pred_check
    _
  $region51: #{gat_net_forward.1} parent=0 // pred_check_branch
    %2576 = sbr.rel (0) target = $region53
  $region52: #{gat_net_forward.1} parent=0 // pred_region
    _
  $region53: #{gat_net_forward.1} parent=0 // pred_fallthru
    _
  // Predicated region
  $region54: #{gat_net_forward.1} parent=0 // pred_check
    _
  $region55: #{gat_net_forward.1} parent=0 // pred_check_branch
    %2578 = sbr.rel (0) target = $region57
  $region56: #{gat_net_forward.1} parent=0 // pred_region
    _
  $region57: #{gat_net_forward.1} parent=0 // pred_fallthru
    _

</llo_original>
